<compile_context>
chip_gen: v5e
topology: v5e:2x2
jax: 0.10.0
libtpu: 0.0.40
codegen_flags: <defaults>
</compile_context>

<pallas_src>
import functools

import jax
import jax.numpy as jnp
from jax.experimental import pallas as pl
from jax.experimental.pallas import tpu as pltpu

_LN_EPS = 1e-5
_PARALLEL = pltpu.CompilerParams(dimension_semantics=("parallel",))


def _row_tile(n, candidates=(512, 256, 128, 64, 32, 16, 8)):
    """Largest row tile (multiple of 8 sublanes) that evenly divides n; else whole n."""
    for t in candidates:
        if n % t == 0:
            return t
    return n


def _layernorm(h, gamma, beta):
    mu = jnp.mean(h, axis=-1, keepdims=True)
    var = jnp.mean(jnp.square(h - mu), axis=-1, keepdims=True)
    return (h - mu) * jax.lax.rsqrt(var + _LN_EPS) * gamma + beta


# ----------------------------------------------------------------------------
# Kernels
# ----------------------------------------------------------------------------
def _qkv_proj_kernel(x_ref, wq_ref, bq_ref, wk_ref, bk_ref, wv_ref, bv_ref,
                     q_ref, k_ref, v_ref):
    # Fused Q/K/V projection: the activation tile is read once, three MXU matmuls.
    x = x_ref[...]
    q_ref[...] = (jnp.dot(x, wq_ref[...], preferred_element_type=jnp.float32)
                  + bq_ref[...]).astype(q_ref.dtype)
    k_ref[...] = (jnp.dot(x, wk_ref[...], preferred_element_type=jnp.float32)
                  + bk_ref[...]).astype(k_ref.dtype)
    v_ref[...] = (jnp.dot(x, wv_ref[...], preferred_element_type=jnp.float32)
                  + bv_ref[...]).astype(v_ref.dtype)


def _kv_proj_kernel(x_ref, wk_ref, bk_ref, wv_ref, bv_ref, k_ref, v_ref):
    x = x_ref[...]
    k_ref[...] = (jnp.dot(x, wk_ref[...], preferred_element_type=jnp.float32)
                  + bk_ref[...]).astype(k_ref.dtype)
    v_ref[...] = (jnp.dot(x, wv_ref[...], preferred_element_type=jnp.float32)
                  + bv_ref[...]).astype(v_ref.dtype)


def _linear_kernel(x_ref, w_ref, b_ref, o_ref):
    o_ref[...] = (jnp.dot(x_ref[...], w_ref[...], preferred_element_type=jnp.float32)
                  + b_ref[...]).astype(o_ref.dtype)


def _mha_core_kernel(q_ref, k_ref, v_ref, bias_ref, o_ref, *, num_heads):
    # One batch element per grid step, ALL heads processed in this step (amortises the
    # per-step overhead).  The additive key-padding bias is built from a (1, Tk) vector
    # in VMEM — no (B*H, Tq, Tk) tensor ever hits HBM.  Heads are split with static lane
    # slices; the softmax denominator uses the EUP approx reciprocal.
    tq, e = q_ref.shape
    tk = k_ref.shape[0]
    dh = e // num_heads
    q = q_ref[...]
    k = k_ref[...]
    v = v_ref[...]
    bias = bias_ref[...]                                   # (1, Tk)
    outs = []
    for h in range(num_heads):                             # static unroll
        sl = slice(h * dh, (h + 1) * dh)
        s = jax.lax.dot_general(q[:, sl], k[:, sl],
                                (((1,), (1,)), ((), ())),  # contract head_dim, no K.T copy
                                preferred_element_type=jnp.float32)
        s = s + bias
        s = s - jnp.max(s, axis=-1, keepdims=True)
        p = jnp.exp(s)
        p = p * pl.reciprocal(jnp.sum(p, axis=-1, keepdims=True), approx=True)
        outs.append(jnp.dot(p, v[:, sl], preferred_element_type=jnp.float32))
    # single lane-dense (Tq, E) store instead of per-head masked partial stores
    o_ref[...] = jnp.concatenate(outs, axis=-1).astype(o_ref.dtype)


def _oproj_add_ln_kernel(a_ref, r_ref, ow_ref, ob_ref, g_ref, bt_ref, o_ref):
    # LayerNorm(residual + attn @ Wo + bo)
    y = jnp.dot(a_ref[...], ow_ref[...], preferred_element_type=jnp.float32) + ob_ref[...]
    h = y + r_ref[...].astype(jnp.float32)
    o_ref[...] = _layernorm(h, g_ref[...], bt_ref[...]).astype(o_ref.dtype)


def _oproj_gate_ln_kernel(a_ref, x_ref, ow_ref, ob_ref, wx_ref, bx_ref,
                          wy_ref, by_ref, g_ref, bt_ref, o_ref):
    # y = attn @ Wo + bo ; gate = sigmoid(x Wx + bx + y Wy + by)
    # out = LayerNorm(gate * x + (1 - gate) * y),  x = ORIGINAL layer input.
    y = jnp.dot(a_ref[...], ow_ref[...], preferred_element_type=jnp.float32) + ob_ref[...]
    x = x_ref[...].astype(jnp.float32)
    gx = jnp.dot(x, wx_ref[...], preferred_element_type=jnp.float32) + bx_ref[...]
    gy = jnp.dot(y, wy_ref[...], preferred_element_type=jnp.float32) + by_ref[...]
    gate = jax.nn.sigmoid(gx + gy)
    h = gate * x + (1.0 - gate) * y
    o_ref[...] = _layernorm(h, g_ref[...], bt_ref[...]).astype(o_ref.dtype)


def _ffn_ln_kernel(x_ref, w1_ref, b1_ref, w2_ref, b2_ref, g_ref, bt_ref, o_ref):
    # LayerNorm(x + fc2(relu(fc1(x))))
    x = x_ref[...]
    h = jnp.maximum(jnp.dot(x, w1_ref[...], preferred_element_type=jnp.float32)
                    + b1_ref[...], 0.0)
    y = jnp.dot(h.astype(x.dtype), w2_ref[...], preferred_element_type=jnp.float32) + b2_ref[...]
    o_ref[...] = _layernorm(x.astype(jnp.float32) + y,
                            g_ref[...], bt_ref[...]).astype(o_ref.dtype)


# ----------------------------------------------------------------------------
# Wrappers (row-tiled grids, weights resident, parallel dimension semantics)
# ----------------------------------------------------------------------------
def pallas_qkv_proj(x2d, wq, bq, wk, bk, wv, bv):
    n, e = x2d.shape
    tn = _row_tile(n)
    row = lambda i: (i, 0)
    const = lambda i: (0, 0)
    return pl.pallas_call(
        _qkv_proj_kernel,
        out_shape=(jax.ShapeDtypeStruct((n, e), x2d.dtype),) * 3,
        grid=(n // tn,),
        in_specs=[pl.BlockSpec((tn, e), row),
                  pl.BlockSpec((e, e), const), pl.BlockSpec((1, e), const),
                  pl.BlockSpec((e, e), const), pl.BlockSpec((1, e), const),
                  pl.BlockSpec((e, e), const), pl.BlockSpec((1, e), const)],
        out_specs=(pl.BlockSpec((tn, e), row),) * 3,
        compiler_params=_PARALLEL,
    )(x2d, wq, bq.reshape(1, e), wk, bk.reshape(1, e), wv, bv.reshape(1, e))


def pallas_kv_proj(x2d, wk, bk, wv, bv):
    n, e = x2d.shape
    tn = _row_tile(n)
    row = lambda i: (i, 0)
    const = lambda i: (0, 0)
    return pl.pallas_call(
        _kv_proj_kernel,
        out_shape=(jax.ShapeDtypeStruct((n, e), x2d.dtype),) * 2,
        grid=(n // tn,),
        in_specs=[pl.BlockSpec((tn, e), row),
                  pl.BlockSpec((e, e), const), pl.BlockSpec((1, e), const),
                  pl.BlockSpec((e, e), const), pl.BlockSpec((1, e), const)],
        out_specs=(pl.BlockSpec((tn, e), row),) * 2,
        compiler_params=_PARALLEL,
    )(x2d, wk, bk.reshape(1, e), wv, bv.reshape(1, e))


def pallas_linear(x2d, w, b):
    n, din = x2d.shape
    dout = w.shape[1]
    tn = _row_tile(n)
    return pl.pallas_call(
        _linear_kernel,
        out_shape=jax.ShapeDtypeStruct((n, dout), x2d.dtype),
        grid=(n // tn,),
        in_specs=[pl.BlockSpec((tn, din), lambda i: (i, 0)),
                  pl.BlockSpec((din, dout), lambda i: (0, 0)),
                  pl.BlockSpec((1, dout), lambda i: (0, 0))],
        out_specs=pl.BlockSpec((tn, dout), lambda i: (i, 0)),
        compiler_params=_PARALLEL,
    )(x2d, w, b.reshape(1, dout))


def pallas_mha_core(q_bt, k_bt, v_bt, bias, num_heads):
    # q_bt: (B, Tq, E)   k_bt/v_bt: (B, Tk, E)   bias: (B, 1, Tk)
    b, tq, e = q_bt.shape
    tk = k_bt.shape[1]
    return pl.pallas_call(
        functools.partial(_mha_core_kernel, num_heads=num_heads),
        out_shape=jax.ShapeDtypeStruct((b, tq, e), q_bt.dtype),
        grid=(b,),
        in_specs=[pl.BlockSpec((None, tq, e), lambda i: (i, 0, 0)),
                  pl.BlockSpec((None, tk, e), lambda i: (i, 0, 0)),
                  pl.BlockSpec((None, tk, e), lambda i: (i, 0, 0)),
                  pl.BlockSpec((None, 1, tk), lambda i: (i, 0, 0))],
        out_specs=pl.BlockSpec((None, tq, e), lambda i: (i, 0, 0)),
        compiler_params=_PARALLEL,
    )(q_bt, k_bt, v_bt, bias)


def pallas_oproj_add_ln(attn2d, res2d, ow, ob, g, bt):
    n, e = attn2d.shape
    tn = _row_tile(n)
    row = lambda i: (i, 0)
    const = lambda i: (0, 0)
    return pl.pallas_call(
        _oproj_add_ln_kernel,
        out_shape=jax.ShapeDtypeStruct((n, e), attn2d.dtype),
        grid=(n // tn,),
        in_specs=[pl.BlockSpec((tn, e), row), pl.BlockSpec((tn, e), row),
                  pl.BlockSpec((e, e), const), pl.BlockSpec((1, e), const),
                  pl.BlockSpec((1, e), const), pl.BlockSpec((1, e), const)],
        out_specs=pl.BlockSpec((tn, e), row),
        compiler_params=_PARALLEL,
    )(attn2d, res2d, ow, ob.reshape(1, e), g.reshape(1, e), bt.reshape(1, e))


def pallas_oproj_gate_ln(attn2d, x2d, ow, ob, wx, bx, wy, by, g, bt):
    n, e = attn2d.shape
    tn = _row_tile(n)
    row = lambda i: (i, 0)
    const = lambda i: (0, 0)
    return pl.pallas_call(
        _oproj_gate_ln_kernel,
        out_shape=jax.ShapeDtypeStruct((n, e), attn2d.dtype),
        grid=(n // tn,),
        in_specs=[pl.BlockSpec((tn, e), row), pl.BlockSpec((tn, e), row),
                  pl.BlockSpec((e, e), const), pl.BlockSpec((1, e), const),
                  pl.BlockSpec((e, e), const), pl.BlockSpec((1, e), const),
                  pl.BlockSpec((e, e), const), pl.BlockSpec((1, e), const),
                  pl.BlockSpec((1, e), const), pl.BlockSpec((1, e), const)],
        out_specs=pl.BlockSpec((tn, e), row),
        compiler_params=_PARALLEL,
    )(attn2d, x2d, ow, ob.reshape(1, e), wx, bx.reshape(1, e),
      wy, by.reshape(1, e), g.reshape(1, e), bt.reshape(1, e))


def pallas_ffn_ln(x2d, w1, b1, w2, b2, g, bt):
    # TODO(synk): for large ffn_dim on v7x (64 MiB VMEM), tile the hidden F dimension with
    # an accumulator grid axis instead of keeping both (E,F) and (F,E) weights resident.
    n, e = x2d.shape
    f = w1.shape[1]
    tn = _row_tile(n)
    row = lambda i: (i, 0)
    const = lambda i: (0, 0)
    return pl.pallas_call(
        _ffn_ln_kernel,
        out_shape=jax.ShapeDtypeStruct((n, e), x2d.dtype),
        grid=(n // tn,),
        in_specs=[pl.BlockSpec((tn, e), row),
                  pl.BlockSpec((e, f), const), pl.BlockSpec((1, f), const),
                  pl.BlockSpec((f, e), const), pl.BlockSpec((1, e), const),
                  pl.BlockSpec((1, e), const), pl.BlockSpec((1, e), const)],
        out_specs=pl.BlockSpec((tn, e), row),
        compiler_params=_PARALLEL,
    )(x2d, w1, b1.reshape(1, f), w2, b2.reshape(1, e), g.reshape(1, e), bt.reshape(1, e))


# ----------------------------------------------------------------------------
# Decoder layer forward (post-norm, encoder_out=None path)
# ----------------------------------------------------------------------------
def _padding_bias(mask, b, tk, dtype):
    if mask is None:
        return jnp.zeros((b, 1, tk), dtype)
    return jnp.where(mask, -1e9, 0.0).astype(dtype).reshape(b, 1, tk)


@functools.partial(jax.jit, static_argnames=("num_heads",))
def decoder_layer_forward(params, x, self_attn_padding_mask, ctx, ctx_mask, num_heads):
    """x: (T, B, E); ctx: (S, B, E); masks: (B, T)/(B, S) bool (True = padded) or None."""
    t, b, e = x.shape
    s = ctx.shape[0]
    dh = e // num_heads
    scaling = dh ** -0.5

    # single batch-major conversion for the whole layer (instead of 4 transposes per MHA)
    x_bt = jnp.transpose(x, (1, 0, 2))         # (B, T, E)
    ctx_bt = jnp.transpose(ctx, (1, 0, 2))     # (B, S, E)
    x2d = x_bt.reshape(b * t, e)               # original layer input, batch-major rows
    ctx2d = ctx_bt.reshape(b * s, e)

    # ---- self-attention block (post-norm) ----
    pa = params["self_attn"]
    # fairseq scales q AFTER the bias add -> fold scale into both weight and bias
    q2d, k2d, v2d = pallas_qkv_proj(x2d, pa["q_w"] * scaling, pa["q_b"] * scaling,
                                    pa["k_w"], pa["k_b"], pa["v_w"], pa["v_b"])
    attn = pallas_mha_core(q2d.reshape(b, t, e), k2d.reshape(b, t, e),
                           v2d.reshape(b, t, e),
                           _padding_bias(self_attn_padding_mask, b, t, x.dtype),
                           num_heads)                                     # (B, T, E)
    x1 = pallas_oproj_add_ln(attn.reshape(b * t, e), x2d,
                             pa["o_w"], pa["o_b"],
                             params["ln_self_w"], params["ln_self_b"])    # (B*T, E)

    # ---- cross-attention over ctx; gated residual against the ORIGINAL layer input ----
    pc = params["cross_attn"]
    qc = pallas_linear(x1, pc["q_w"] * scaling, pc["q_b"] * scaling)
    kc, vc = pallas_kv_proj(ctx2d, pc["k_w"], pc["k_b"], pc["v_w"], pc["v_b"])
    attn_c = pallas_mha_core(qc.reshape(b, t, e), kc.reshape(b, s, e),
                             vc.reshape(b, s, e),
                             _padding_bias(ctx_mask, b, s, x.dtype), num_heads)
    x2 = pallas_oproj_gate_ln(attn_c.reshape(b * t, e), x2d,
                              pc["o_w"], pc["o_b"],
                              params["gate_wx"], params["gate_bx"],
                              params["gate_wy"], params["gate_by"],
                              params["ln_cross_w"], params["ln_cross_b"])

    # TODO(synk): encoder_attn block skipped (example runs with encoder_out=None, matching
    # the reference's `if encoder_out is not None:` guard); incremental_state / attn_mask
    # (causal decoding / KV caching) paths not implemented.

    # ---- FFN + residual + final LayerNorm ----
    x3 = pallas_ffn_ln(x2, params["fc1_w"], params["fc1_b"],
                       params["fc2_w"], params["fc2_b"],
                       params["ln_final_w"], params["ln_final_b"])

    return jnp.transpose(x3.reshape(b, t, e), (1, 0, 2))   # back to (T, B, E)


# ----------------------------------------------------------------------------
# Parameter init (xavier-uniform weights, zero biases — like the PyTorch Linear helper)
# ----------------------------------------------------------------------------
def xavier_uniform(key, fan_in, fan_out, dtype=jnp.float32):
    bound = (6.0 / (fan_in + fan_out)) ** 0.5
    return jax.random.uniform(key, (fan_in, fan_out), dtype, -bound, bound)


def init_params(key, embed_dim, ffn_dim):
    e, f = embed_dim, ffn_dim
    ks = jax.random.split(key, 12)
    z = jnp.zeros((e,), jnp.float32)

    def mha(k0, k1, k2, k3):
        return {"q_w": xavier_uniform(k0, e, e), "q_b": z,
                "k_w": xavier_uniform(k1, e, e), "k_b": z,
                "v_w": xavier_uniform(k2, e, e), "v_b": z,
                "o_w": xavier_uniform(k3, e, e), "o_b": z}

    return {
        "self_attn": mha(*ks[0:4]),
        "cross_attn": mha(*ks[4:8]),
        "ln_self_w": jnp.ones((e,), jnp.float32), "ln_self_b": z,
        "ln_cross_w": jnp.ones((e,), jnp.float32), "ln_cross_b": z,
        "ln_final_w": jnp.ones((e,), jnp.float32), "ln_final_b": z,
        "gate_wx": xavier_uniform(ks[8], e, e), "gate_bx": z,
        "gate_wy": xavier_uniform(ks[9], e, e), "gate_by": z,
        "fc1_w": xavier_uniform(ks[10], e, f), "fc1_b": jnp.zeros((f,), jnp.float32),
        "fc2_w": xavier_uniform(ks[11], f, e), "fc2_b": z,
    }


# ----------------------------------------------------------------------------
# Pure-JAX reference (mirrors the PyTorch DecoderLayer with normalize_before=False)
# ----------------------------------------------------------------------------
def _mha_reference(q_in, kv_in, p, mask, num_heads):
    tq, b, e = q_in.shape
    tk = kv_in.shape[0]
    h = num_heads
    dh = e // h
    scaling = dh ** -0.5
    q = (q_in.reshape(tq * b, e) @ p["q_w"] + p["q_b"]) * scaling
    k = kv_in.reshape(tk * b, e) @ p["k_w"] + p["k_b"]
    v = kv_in.reshape(tk * b, e) @ p["v_w"] + p["v_b"]
    q = q.reshape(tq, b * h, dh).transpose(1, 0, 2)
    k = k.reshape(tk, b * h, dh).transpose(1, 0, 2)
    v = v.reshape(tk, b * h, dh).transpose(1, 0, 2)
    s = jnp.einsum("bqd,bkd->bqk", q, k)
    if mask is not None:
        s = s + jnp.where(jnp.repeat(mask, h, axis=0)[:, None, :], -1e9, 0.0)
    p_attn = jax.nn.softmax(s, axis=-1)
    o = jnp.einsum("bqk,bkd->bqd", p_attn, v)
    o = o.transpose(1, 0, 2).reshape(tq * b, e) @ p["o_w"] + p["o_b"]
    return o.reshape(tq, b, e)


def _layer_reference(params, x, self_pad, ctx, ctx_mask, num_heads):
    t, b, e = x.shape

    def ln(h, w, bb):
        mu = h.mean(-1, keepdims=True)
        var = ((h - mu) ** 2).mean(-1, keepdims=True)
        return (h - mu) / jnp.sqrt(var + _LN_EPS) * w + bb

    residual = x
    y = _mha_reference(x, x, params["self_attn"], self_pad, num_heads)
    x1 = ln(residual + y, params["ln_self_w"], params["ln_self_b"])
    yc = _mha_reference(x1, ctx, params["cross_attn"], ctx_mask, num_heads)
    r2 = residual.reshape(t * b, e)
    y2 = yc.reshape(t * b, e)
    gate = jax.nn.sigmoid(r2 @ params["gate_wx"] + params["gate_bx"]
                          + y2 @ params["gate_wy"] + params["gate_by"])
    x2 = ln(gate * r2 + (1.0 - gate) * y2, params["ln_cross_w"], params["ln_cross_b"])
    h = jnp.maximum(x2 @ params["fc1_w"] + params["fc1_b"], 0.0)
    x3 = ln(x2 + h @ params["fc2_w"] + params["fc2_b"],
            params["ln_final_w"], params["ln_final_b"])
    return x3.reshape(t, b, e)


# ----------------------------------------------------------------------------
if __name__ == "__main__":
    SEQ, BATCH, EMBED, HEADS, FFN, CTX_LEN = 8, 2, 32, 4, 64, 8

    root = jax.random.PRNGKey(0)
    k_param, k_x, k_ctx = jax.random.split(root, 3)

    params = init_params(k_param, EMBED, FFN)
    x = jax.random.normal(k_x, (SEQ, BATCH, EMBED), jnp.float32)       # (seq, batch, embed)
    ctx = jax.random.normal(k_ctx, (CTX_LEN, BATCH, EMBED), jnp.float32)

    # padding masks: True = padded. batch 0 unpadded, batch 1 has 2 padded tail positions.
    self_pad = jnp.array([[False] * SEQ,
                          [False] * (SEQ - 2) + [True] * 2], dtype=bool)
    ctx_mask = jnp.array([[False] * CTX_LEN,
                          [False] * (CTX_LEN - 2) + [True] * 2], dtype=bool)

    out = decoder_layer_forward(params, x, self_pad, ctx, ctx_mask, HEADS)
    out = jax.block_until_ready(out)

    assert out.shape == (SEQ, BATCH, EMBED)
    assert bool(jnp.all(jnp.isfinite(out)))

    # cross-check against a pure-JAX reference of the module forward
    ref = _layer_reference(params, x, self_pad, ctx, ctx_mask, HEADS)
    assert bool(jnp.allclose(out, ref, atol=2e-2, rtol=2e-2)), float(jnp.max(jnp.abs(out - ref)))

    print("KERNEL_OK")
</pallas_src>

<mosaic_0001>
module attributes {stable_mosaic.version = 11 : i64} {
  func.func @_qkv_proj_kernel(%arg0: i32, %arg1: memref<16x32xf32, #tpu.memory_space<vmem>>, %arg2: memref<32x32xf32, #tpu.memory_space<vmem>>, %arg3: memref<1x32xf32, #tpu.memory_space<vmem>>, %arg4: memref<32x32xf32, #tpu.memory_space<vmem>>, %arg5: memref<1x32xf32, #tpu.memory_space<vmem>>, %arg6: memref<32x32xf32, #tpu.memory_space<vmem>>, %arg7: memref<1x32xf32, #tpu.memory_space<vmem>>, %arg8: memref<16x32xf32, #tpu.memory_space<vmem>>, %arg9: memref<16x32xf32, #tpu.memory_space<vmem>>, %arg10: memref<16x32xf32, #tpu.memory_space<vmem>>) attributes {dimension_semantics = [#tpu.dimension_semantics<parallel>], iteration_bounds = array<i64: 1>, scalar_prefetch = 0 : i64, scratch_operands = 0 : i64, tpu.core_type = #tpu.core_type<tc>, window_params = [{transform_indices = @transform_0, window_bounds = array<i64: 16, 32>}, {pipeline_mode = #tpu.pipeline_mode<synchronous>, transform_indices = @transform_1, window_bounds = array<i64: 32, 32>}, {pipeline_mode = #tpu.pipeline_mode<synchronous>, transform_indices = @transform_2, window_bounds = array<i64: 1, 32>}, {pipeline_mode = #tpu.pipeline_mode<synchronous>, transform_indices = @transform_3, window_bounds = array<i64: 32, 32>}, {pipeline_mode = #tpu.pipeline_mode<synchronous>, transform_indices = @transform_4, window_bounds = array<i64: 1, 32>}, {pipeline_mode = #tpu.pipeline_mode<synchronous>, transform_indices = @transform_5, window_bounds = array<i64: 32, 32>}, {pipeline_mode = #tpu.pipeline_mode<synchronous>, transform_indices = @transform_6, window_bounds = array<i64: 1, 32>}, {transform_indices = @transform_7, window_bounds = array<i64: 16, 32>}, {transform_indices = @transform_8, window_bounds = array<i64: 16, 32>}, {transform_indices = @transform_9, window_bounds = array<i64: 16, 32>}]} {
    %c0 = arith.constant 0 : index
    %c0_0 = arith.constant 0 : index
    %0 = vector.load %arg1[%c0, %c0_0] : memref<16x32xf32, #tpu.memory_space<vmem>>, vector<16x32xf32>
    %c0_1 = arith.constant 0 : index
    %c0_2 = arith.constant 0 : index
    %1 = vector.load %arg2[%c0_1, %c0_2] : memref<32x32xf32, #tpu.memory_space<vmem>>, vector<32x32xf32>
    %cst = arith.constant dense<0.000000e+00> : vector<16x32xf32>
    %2 = tpu.matmul %0, %1, %cst {dimension_numbers = #tpu.dot_dimension_numbers<[1], [0], [0], [1], [0, 0, 1, 1], [], []>} : vector<16x32xf32>, vector<32x32xf32>, vector<16x32xf32> -> vector<16x32xf32>
    %c0_3 = arith.constant 0 : index
    %c0_4 = arith.constant 0 : index
    %3 = vector.load %arg3[%c0_3, %c0_4] : memref<1x32xf32, #tpu.memory_space<vmem>>, vector<1x32xf32>
    %4 = vector.broadcast %3 : vector<1x32xf32> to vector<16x32xf32>
    %5 = arith.addf %2, %4 : vector<16x32xf32>
    %c0_5 = arith.constant 0 : index
    %c0_6 = arith.constant 0 : index
    %6 = vector.load %arg8[%c0_5, %c0_6] : memref<16x32xf32, #tpu.memory_space<vmem>>, vector<16x32xf32>
    tpu.vector_store %arg8[%c0_5, %c0_6], %5 {strides = array<i32>} : memref<16x32xf32, #tpu.memory_space<vmem>>, vector<16x32xf32>,
    %c0_7 = arith.constant 0 : index
    %c0_8 = arith.constant 0 : index
    %7 = vector.load %arg4[%c0_7, %c0_8] : memref<32x32xf32, #tpu.memory_space<vmem>>, vector<32x32xf32>
    %cst_9 = arith.constant dense<0.000000e+00> : vector<16x32xf32>
    %8 = tpu.matmul %0, %7, %cst_9 {dimension_numbers = #tpu.dot_dimension_numbers<[1], [0], [0], [1], [0, 0, 1, 1], [], []>} : vector<16x32xf32>, vector<32x32xf32>, vector<16x32xf32> -> vector<16x32xf32>
    %c0_10 = arith.constant 0 : index
    %c0_11 = arith.constant 0 : index
    %9 = vector.load %arg5[%c0_10, %c0_11] : memref<1x32xf32, #tpu.memory_space<vmem>>, vector<1x32xf32>
    %10 = vector.broadcast %9 : vector<1x32xf32> to vector<16x32xf32>
    %11 = arith.addf %8, %10 : vector<16x32xf32>
    %c0_12 = arith.constant 0 : index
    %c0_13 = arith.constant 0 : index
    %12 = vector.load %arg9[%c0_12, %c0_13] : memref<16x32xf32, #tpu.memory_space<vmem>>, vector<16x32xf32>
    tpu.vector_store %arg9[%c0_12, %c0_13], %11 {strides = array<i32>} : memref<16x32xf32, #tpu.memory_space<vmem>>, vector<16x32xf32>,
    %c0_14 = arith.constant 0 : index
    %c0_15 = arith.constant 0 : index
    %13 = vector.load %arg6[%c0_14, %c0_15] : memref<32x32xf32, #tpu.memory_space<vmem>>, vector<32x32xf32>
    %cst_16 = arith.constant dense<0.000000e+00> : vector<16x32xf32>
    %14 = tpu.matmul %0, %13, %cst_16 {dimension_numbers = #tpu.dot_dimension_numbers<[1], [0], [0], [1], [0, 0, 1, 1], [], []>} : vector<16x32xf32>, vector<32x32xf32>, vector<16x32xf32> -> vector<16x32xf32>
    %c0_17 = arith.constant 0 : index
    %c0_18 = arith.constant 0 : index
    %15 = vector.load %arg7[%c0_17, %c0_18] : memref<1x32xf32, #tpu.memory_space<vmem>>, vector<1x32xf32>
    %16 = vector.broadcast %15 : vector<1x32xf32> to vector<16x32xf32>
    %17 = arith.addf %14, %16 : vector<16x32xf32>
    %c0_19 = arith.constant 0 : index
    %c0_20 = arith.constant 0 : index
    %18 = vector.load %arg10[%c0_19, %c0_20] : memref<16x32xf32, #tpu.memory_space<vmem>>, vector<16x32xf32>
    tpu.vector_store %arg10[%c0_19, %c0_20], %17 {strides = array<i32>} : memref<16x32xf32, #tpu.memory_space<vmem>>, vector<16x32xf32>,
    return
  }
  func.func @transform_0(%arg0: i32) -> (i32, i32) {
    %c0_i32 = arith.constant 0 : i32
    %c0_i32_0 = arith.constant 0 : i32
    return %arg0, %c0_i32 : i32, i32
  }
  func.func @transform_1(%arg0: i32) -> (i32, i32) {
    %c0_i32 = arith.constant 0 : i32
    %c0_i32_0 = arith.constant 0 : i32
    %c0_i32_1 = arith.constant 0 : i32
    return %c0_i32, %c0_i32_0 : i32, i32
  }
  func.func @transform_2(%arg0: i32) -> (i32, i32) {
    %c0_i32 = arith.constant 0 : i32
    %c0_i32_0 = arith.constant 0 : i32
    %c0_i32_1 = arith.constant 0 : i32
    return %c0_i32, %c0_i32_0 : i32, i32
  }
  func.func @transform_3(%arg0: i32) -> (i32, i32) {
    %c0_i32 = arith.constant 0 : i32
    %c0_i32_0 = arith.constant 0 : i32
    %c0_i32_1 = arith.constant 0 : i32
    return %c0_i32, %c0_i32_0 : i32, i32
  }
  func.func @transform_4(%arg0: i32) -> (i32, i32) {
    %c0_i32 = arith.constant 0 : i32
    %c0_i32_0 = arith.constant 0 : i32
    %c0_i32_1 = arith.constant 0 : i32
    return %c0_i32, %c0_i32_0 : i32, i32
  }
  func.func @transform_5(%arg0: i32) -> (i32, i32) {
    %c0_i32 = arith.constant 0 : i32
    %c0_i32_0 = arith.constant 0 : i32
    %c0_i32_1 = arith.constant 0 : i32
    return %c0_i32, %c0_i32_0 : i32, i32
  }
  func.func @transform_6(%arg0: i32) -> (i32, i32) {
    %c0_i32 = arith.constant 0 : i32
    %c0_i32_0 = arith.constant 0 : i32
    %c0_i32_1 = arith.constant 0 : i32
    return %c0_i32, %c0_i32_0 : i32, i32
  }
  func.func @transform_7(%arg0: i32) -> (i32, i32) {
    %c0_i32 = arith.constant 0 : i32
    %c0_i32_0 = arith.constant 0 : i32
    return %arg0, %c0_i32 : i32, i32
  }
  func.func @transform_8(%arg0: i32) -> (i32, i32) {
    %c0_i32 = arith.constant 0 : i32
    %c0_i32_0 = arith.constant 0 : i32
    return %arg0, %c0_i32 : i32, i32
  }
  func.func @transform_9(%arg0: i32) -> (i32, i32) {
    %c0_i32 = arith.constant 0 : i32
    %c0_i32_0 = arith.constant 0 : i32
    return %arg0, %c0_i32 : i32, i32
  }
}

module attributes {stable_mosaic.version = 11 : i64} {
  func.func @_mha_core_kernel(%arg0: i32, %arg1: memref<1x8x32xf32, #tpu.memory_space<vmem>>, %arg2: memref<1x8x32xf32, #tpu.memory_space<vmem>>, %arg3: memref<1x8x32xf32, #tpu.memory_space<vmem>>, %arg4: memref<1x1x8xf32, #tpu.memory_space<vmem>>, %arg5: memref<1x8x32xf32, #tpu.memory_space<vmem>>) attributes {dimension_semantics = [#tpu.dimension_semantics<parallel>], iteration_bounds = array<i64: 2>, scalar_prefetch = 0 : i64, scratch_operands = 0 : i64, tpu.core_type = #tpu.core_type<tc>, window_params = [{transform_indices = @transform_0, window_bounds = array<i64: 1, 8, 32>}, {transform_indices = @transform_1, window_bounds = array<i64: 1, 8, 32>}, {transform_indices = @transform_2, window_bounds = array<i64: 1, 8, 32>}, {transform_indices = @transform_3, window_bounds = array<i64: 1, 1, 8>}, {transform_indices = @transform_4, window_bounds = array<i64: 1, 8, 32>}]} {
    %c0 = arith.constant 0 : index
    %c0_0 = arith.constant 0 : index
    %c0_1 = arith.constant 0 : index
    %0 = vector.load %arg1[%c0, %c0_0, %c0_1] : memref<1x8x32xf32, #tpu.memory_space<vmem>>, vector<1x8x32xf32>
    %1 = vector.shape_cast %0 : vector<1x8x32xf32> to vector<8x32xf32>
    %c0_2 = arith.constant 0 : index
    %c0_3 = arith.constant 0 : index
    %c0_4 = arith.constant 0 : index
    %2 = vector.load %arg2[%c0_2, %c0_3, %c0_4] : memref<1x8x32xf32, #tpu.memory_space<vmem>>, vector<1x8x32xf32>
    %3 = vector.shape_cast %2 : vector<1x8x32xf32> to vector<8x32xf32>
    %c0_5 = arith.constant 0 : index
    %c0_6 = arith.constant 0 : index
    %c0_7 = arith.constant 0 : index
    %4 = vector.load %arg3[%c0_5, %c0_6, %c0_7] : memref<1x8x32xf32, #tpu.memory_space<vmem>>, vector<1x8x32xf32>
    %5 = vector.shape_cast %4 : vector<1x8x32xf32> to vector<8x32xf32>
    %c0_8 = arith.constant 0 : index
    %c0_9 = arith.constant 0 : index
    %c0_10 = arith.constant 0 : index
    %6 = vector.load %arg4[%c0_8, %c0_9, %c0_10] : memref<1x1x8xf32, #tpu.memory_space<vmem>>, vector<1x1x8xf32>
    %7 = vector.shape_cast %6 : vector<1x1x8xf32> to vector<1x8xf32>
    %8 = vector.extract_strided_slice %1 {offsets = [0, 0], sizes = [8, 8], strides = [1, 1]} : vector<8x32xf32> to vector<8x8xf32>
    %9 = vector.extract_strided_slice %3 {offsets = [0, 0], sizes = [8, 8], strides = [1, 1]} : vector<8x32xf32> to vector<8x8xf32>
    %cst = arith.constant dense<0.000000e+00> : vector<8x8xf32>
    %10 = tpu.matmul %8, %9, %cst {dimension_numbers = #tpu.dot_dimension_numbers<[1], [1], [0], [0], [0, 0, 1, 0], [], []>} : vector<8x8xf32>, vector<8x8xf32>, vector<8x8xf32> -> vector<8x8xf32>
    %11 = vector.broadcast %7 : vector<1x8xf32> to vector<8x8xf32>
    %12 = arith.addf %10, %11 : vector<8x8xf32>
    %cst_11 = arith.constant dense<0xFF800000> : vector<8xf32>
    %13 = vector.multi_reduction <maximumf>, %12, %cst_11 [1] : vector<8x8xf32> to vector<8xf32>
    %14 = vector.shape_cast %13 : vector<8xf32> to vector<8x1xf32>
    %15 = vector.broadcast %14 : vector<8x1xf32> to vector<8x8xf32>
    %16 = arith.subf %12, %15 : vector<8x8xf32>
    %17 = math.exp %16 : vector<8x8xf32>
    %cst_12 = arith.constant dense<0.000000e+00> : vector<8xf32>
    %18 = vector.multi_reduction <add>, %17, %cst_12 [1] : vector<8x8xf32> to vector<8xf32>
    %19 = vector.shape_cast %18 : vector<8xf32> to vector<8x1xf32>
    %20 = tpu.reciprocal %19 {approx = true} : vector<8x1xf32> -> vector<8x1xf32>
    %21 = vector.broadcast %20 : vector<8x1xf32> to vector<8x8xf32>
    %22 = arith.mulf %17, %21 : vector<8x8xf32>
    %23 = vector.extract_strided_slice %5 {offsets = [0, 0], sizes = [8, 8], strides = [1, 1]} : vector<8x32xf32> to vector<8x8xf32>
    %cst_13 = arith.constant dense<0.000000e+00> : vector<8x8xf32>
    %24 = tpu.matmul %22, %23, %cst_13 {dimension_numbers = #tpu.dot_dimension_numbers<[1], [0], [0], [1], [0, 0, 1, 1], [], []>} : vector<8x8xf32>, vector<8x8xf32>, vector<8x8xf32> -> vector<8x8xf32>
    %25 = vector.extract_strided_slice %1 {offsets = [0, 8], sizes = [8, 8], strides = [1, 1]} : vector<8x32xf32> to vector<8x8xf32>
    %26 = vector.extract_strided_slice %3 {offsets = [0, 8], sizes = [8, 8], strides = [1, 1]} : vector<8x32xf32> to vector<8x8xf32>
    %cst_14 = arith.constant dense<0.000000e+00> : vector<8x8xf32>
    %27 = tpu.matmul %25, %26, %cst_14 {dimension_numbers = #tpu.dot_dimension_numbers<[1], [1], [0], [0], [0, 0, 1, 0], [], []>} : vector<8x8xf32>, vector<8x8xf32>, vector<8x8xf32> -> vector<8x8xf32>
    %28 = vector.broadcast %7 : vector<1x8xf32> to vector<8x8xf32>
    %29 = arith.addf %27, %28 : vector<8x8xf32>
    %cst_15 = arith.constant dense<0xFF800000> : vector<8xf32>
    %30 = vector.multi_reduction <maximumf>, %29, %cst_15 [1] : vector<8x8xf32> to vector<8xf32>
    %31 = vector.shape_cast %30 : vector<8xf32> to vector<8x1xf32>
    %32 = vector.broadcast %31 : vector<8x1xf32> to vector<8x8xf32>
    %33 = arith.subf %29, %32 : vector<8x8xf32>
    %34 = math.exp %33 : vector<8x8xf32>
    %cst_16 = arith.constant dense<0.000000e+00> : vector<8xf32>
    %35 = vector.multi_reduction <add>, %34, %cst_16 [1] : vector<8x8xf32> to vector<8xf32>
    %36 = vector.shape_cast %35 : vector<8xf32> to vector<8x1xf32>
    %37 = tpu.reciprocal %36 {approx = true} : vector<8x1xf32> -> vector<8x1xf32>
    %38 = vector.broadcast %37 : vector<8x1xf32> to vector<8x8xf32>
    %39 = arith.mulf %34, %38 : vector<8x8xf32>
    %40 = vector.extract_strided_slice %5 {offsets = [0, 8], sizes = [8, 8], strides = [1, 1]} : vector<8x32xf32> to vector<8x8xf32>
    %cst_17 = arith.constant dense<0.000000e+00> : vector<8x8xf32>
    %41 = tpu.matmul %39, %40, %cst_17 {dimension_numbers = #tpu.dot_dimension_numbers<[1], [0], [0], [1], [0, 0, 1, 1], [], []>} : vector<8x8xf32>, vector<8x8xf32>, vector<8x8xf32> -> vector<8x8xf32>
    %42 = vector.extract_strided_slice %1 {offsets = [0, 16], sizes = [8, 8], strides = [1, 1]} : vector<8x32xf32> to vector<8x8xf32>
    %43 = vector.extract_strided_slice %3 {offsets = [0, 16], sizes = [8, 8], strides = [1, 1]} : vector<8x32xf32> to vector<8x8xf32>
    %cst_18 = arith.constant dense<0.000000e+00> : vector<8x8xf32>
    %44 = tpu.matmul %42, %43, %cst_18 {dimension_numbers = #tpu.dot_dimension_numbers<[1], [1], [0], [0], [0, 0, 1, 0], [], []>} : vector<8x8xf32>, vector<8x8xf32>, vector<8x8xf32> -> vector<8x8xf32>
    %45 = vector.broadcast %7 : vector<1x8xf32> to vector<8x8xf32>
    %46 = arith.addf %44, %45 : vector<8x8xf32>
    %cst_19 = arith.constant dense<0xFF800000> : vector<8xf32>
    %47 = vector.multi_reduction <maximumf>, %46, %cst_19 [1] : vector<8x8xf32> to vector<8xf32>
    %48 = vector.shape_cast %47 : vector<8xf32> to vector<8x1xf32>
    %49 = vector.broadcast %48 : vector<8x1xf32> to vector<8x8xf32>
    %50 = arith.subf %46, %49 : vector<8x8xf32>
    %51 = math.exp %50 : vector<8x8xf32>
    %cst_20 = arith.constant dense<0.000000e+00> : vector<8xf32>
    %52 = vector.multi_reduction <add>, %51, %cst_20 [1] : vector<8x8xf32> to vector<8xf32>
    %53 = vector.shape_cast %52 : vector<8xf32> to vector<8x1xf32>
    %54 = tpu.reciprocal %53 {approx = true} : vector<8x1xf32> -> vector<8x1xf32>
    %55 = vector.broadcast %54 : vector<8x1xf32> to vector<8x8xf32>
    %56 = arith.mulf %51, %55 : vector<8x8xf32>
    %57 = vector.extract_strided_slice %5 {offsets = [0, 16], sizes = [8, 8], strides = [1, 1]} : vector<8x32xf32> to vector<8x8xf32>
    %cst_21 = arith.constant dense<0.000000e+00> : vector<8x8xf32>
    %58 = tpu.matmul %56, %57, %cst_21 {dimension_numbers = #tpu.dot_dimension_numbers<[1], [0], [0], [1], [0, 0, 1, 1], [], []>} : vector<8x8xf32>, vector<8x8xf32>, vector<8x8xf32> -> vector<8x8xf32>
    %59 = vector.extract_strided_slice %1 {offsets = [0, 24], sizes = [8, 8], strides = [1, 1]} : vector<8x32xf32> to vector<8x8xf32>
    %60 = vector.extract_strided_slice %3 {offsets = [0, 24], sizes = [8, 8], strides = [1, 1]} : vector<8x32xf32> to vector<8x8xf32>
    %cst_22 = arith.constant dense<0.000000e+00> : vector<8x8xf32>
    %61 = tpu.matmul %59, %60, %cst_22 {dimension_numbers = #tpu.dot_dimension_numbers<[1], [1], [0], [0], [0, 0, 1, 0], [], []>} : vector<8x8xf32>, vector<8x8xf32>, vector<8x8xf32> -> vector<8x8xf32>
    %62 = vector.broadcast %7 : vector<1x8xf32> to vector<8x8xf32>
    %63 = arith.addf %61, %62 : vector<8x8xf32>
    %cst_23 = arith.constant dense<0xFF800000> : vector<8xf32>
    %64 = vector.multi_reduction <maximumf>, %63, %cst_23 [1] : vector<8x8xf32> to vector<8xf32>
    %65 = vector.shape_cast %64 : vector<8xf32> to vector<8x1xf32>
    %66 = vector.broadcast %65 : vector<8x1xf32> to vector<8x8xf32>
    %67 = arith.subf %63, %66 : vector<8x8xf32>
    %68 = math.exp %67 : vector<8x8xf32>
    %cst_24 = arith.constant dense<0.000000e+00> : vector<8xf32>
    %69 = vector.multi_reduction <add>, %68, %cst_24 [1] : vector<8x8xf32> to vector<8xf32>
    %70 = vector.shape_cast %69 : vector<8xf32> to vector<8x1xf32>
    %71 = tpu.reciprocal %70 {approx = true} : vector<8x1xf32> -> vector<8x1xf32>
    %72 = vector.broadcast %71 : vector<8x1xf32> to vector<8x8xf32>
    %73 = arith.mulf %68, %72 : vector<8x8xf32>
    %74 = vector.extract_strided_slice %5 {offsets = [0, 24], sizes = [8, 8], strides = [1, 1]} : vector<8x32xf32> to vector<8x8xf32>
    %cst_25 = arith.constant dense<0.000000e+00> : vector<8x8xf32>
    %75 = tpu.matmul %73, %74, %cst_25 {dimension_numbers = #tpu.dot_dimension_numbers<[1], [0], [0], [1], [0, 0, 1, 1], [], []>} : vector<8x8xf32>, vector<8x8xf32>, vector<8x8xf32> -> vector<8x8xf32>
    %76 = tpu.concatenate %24, %41, %58, %75 in 1 : vector<8x8xf32>, vector<8x8xf32>, vector<8x8xf32>, vector<8x8xf32> -> vector<8x32xf32>
    %c0_26 = arith.constant 0 : index
    %c0_27 = arith.constant 0 : index
    %c0_28 = arith.constant 0 : index
    %77 = vector.load %arg5[%c0_26, %c0_27, %c0_28] : memref<1x8x32xf32, #tpu.memory_space<vmem>>, vector<1x8x32xf32>
    %78 = vector.shape_cast %77 : vector<1x8x32xf32> to vector<8x32xf32>
    %79 = vector.shape_cast %76 : vector<8x32xf32> to vector<1x8x32xf32>
    tpu.vector_store %arg5[%c0_26, %c0_27, %c0_28], %79 {strides = array<i32>} : memref<1x8x32xf32, #tpu.memory_space<vmem>>, vector<1x8x32xf32>,
    return
  }
  func.func @transform_0(%arg0: i32) -> (i32, i32, i32) {
    %c0_i32 = arith.constant 0 : i32
    %c0_i32_0 = arith.constant 0 : i32
    %c0_i32_1 = arith.constant 0 : i32
    return %arg0, %c0_i32, %c0_i32_0 : i32, i32, i32
  }
  func.func @transform_1(%arg0: i32) -> (i32, i32, i32) {
    %c0_i32 = arith.constant 0 : i32
    %c0_i32_0 = arith.constant 0 : i32
    %c0_i32_1 = arith.constant 0 : i32
    return %arg0, %c0_i32, %c0_i32_0 : i32, i32, i32
  }
  func.func @transform_2(%arg0: i32) -> (i32, i32, i32) {
    %c0_i32 = arith.constant 0 : i32
    %c0_i32_0 = arith.constant 0 : i32
    %c0_i32_1 = arith.constant 0 : i32
    return %arg0, %c0_i32, %c0_i32_0 : i32, i32, i32
  }
  func.func @transform_3(%arg0: i32) -> (i32, i32, i32) {
    %c0_i32 = arith.constant 0 : i32
    %c0_i32_0 = arith.constant 0 : i32
    %c0_i32_1 = arith.constant 0 : i32
    return %arg0, %c0_i32, %c0_i32_0 : i32, i32, i32
  }
  func.func @transform_4(%arg0: i32) -> (i32, i32, i32) {
    %c0_i32 = arith.constant 0 : i32
    %c0_i32_0 = arith.constant 0 : i32
    %c0_i32_1 = arith.constant 0 : i32
    return %arg0, %c0_i32, %c0_i32_0 : i32, i32, i32
  }
}

module attributes {stable_mosaic.version = 11 : i64} {
  func.func @_oproj_add_ln_kernel(%arg0: i32, %arg1: memref<16x32xf32, #tpu.memory_space<vmem>>, %arg2: memref<16x32xf32, #tpu.memory_space<vmem>>, %arg3: memref<32x32xf32, #tpu.memory_space<vmem>>, %arg4: memref<1x32xf32, #tpu.memory_space<vmem>>, %arg5: memref<1x32xf32, #tpu.memory_space<vmem>>, %arg6: memref<1x32xf32, #tpu.memory_space<vmem>>, %arg7: memref<16x32xf32, #tpu.memory_space<vmem>>) attributes {dimension_semantics = [#tpu.dimension_semantics<parallel>], iteration_bounds = array<i64: 1>, scalar_prefetch = 0 : i64, scratch_operands = 0 : i64, tpu.core_type = #tpu.core_type<tc>, window_params = [{transform_indices = @transform_0, window_bounds = array<i64: 16, 32>}, {transform_indices = @transform_1, window_bounds = array<i64: 16, 32>}, {pipeline_mode = #tpu.pipeline_mode<synchronous>, transform_indices = @transform_2, window_bounds = array<i64: 32, 32>}, {pipeline_mode = #tpu.pipeline_mode<synchronous>, transform_indices = @transform_3, window_bounds = array<i64: 1, 32>}, {pipeline_mode = #tpu.pipeline_mode<synchronous>, transform_indices = @transform_4, window_bounds = array<i64: 1, 32>}, {pipeline_mode = #tpu.pipeline_mode<synchronous>, transform_indices = @transform_5, window_bounds = array<i64: 1, 32>}, {transform_indices = @transform_6, window_bounds = array<i64: 16, 32>}]} {
    %c0 = arith.constant 0 : index
    %c0_0 = arith.constant 0 : index
    %0 = vector.load %arg1[%c0, %c0_0] : memref<16x32xf32, #tpu.memory_space<vmem>>, vector<16x32xf32>
    %c0_1 = arith.constant 0 : index
    %c0_2 = arith.constant 0 : index
    %1 = vector.load %arg3[%c0_1, %c0_2] : memref<32x32xf32, #tpu.memory_space<vmem>>, vector<32x32xf32>
    %cst = arith.constant dense<0.000000e+00> : vector<16x32xf32>
    %2 = tpu.matmul %0, %1, %cst {dimension_numbers = #tpu.dot_dimension_numbers<[1], [0], [0], [1], [0, 0, 1, 1], [], []>} : vector<16x32xf32>, vector<32x32xf32>, vector<16x32xf32> -> vector<16x32xf32>
    %c0_3 = arith.constant 0 : index
    %c0_4 = arith.constant 0 : index
    %3 = vector.load %arg4[%c0_3, %c0_4] : memref<1x32xf32, #tpu.memory_space<vmem>>, vector<1x32xf32>
    %4 = vector.broadcast %3 : vector<1x32xf32> to vector<16x32xf32>
    %5 = arith.addf %2, %4 : vector<16x32xf32>
    %c0_5 = arith.constant 0 : index
    %c0_6 = arith.constant 0 : index
    %6 = vector.load %arg2[%c0_5, %c0_6] : memref<16x32xf32, #tpu.memory_space<vmem>>, vector<16x32xf32>
    %7 = arith.addf %5, %6 : vector<16x32xf32>
    %c0_7 = arith.constant 0 : index
    %c0_8 = arith.constant 0 : index
    %8 = vector.load %arg5[%c0_7, %c0_8] : memref<1x32xf32, #tpu.memory_space<vmem>>, vector<1x32xf32>
    %c0_9 = arith.constant 0 : index
    %c0_10 = arith.constant 0 : index
    %9 = vector.load %arg6[%c0_9, %c0_10] : memref<1x32xf32, #tpu.memory_space<vmem>>, vector<1x32xf32>
    %cst_11 = arith.constant dense<0.000000e+00> : vector<16xf32>
    %10 = vector.multi_reduction <add>, %7, %cst_11 [1] : vector<16x32xf32> to vector<16xf32>
    %11 = vector.shape_cast %10 : vector<16xf32> to vector<16x1xf32>
    %cst_12 = arith.constant 3.200000e+01 : f32
    %12 = vector.broadcast %cst_12 : f32 to vector<16x1xf32>
    %13 = arith.divf %11, %12 : vector<16x1xf32>
    %14 = vector.broadcast %13 : vector<16x1xf32> to vector<16x32xf32>
    %15 = arith.subf %7, %14 : vector<16x32xf32>
    %16 = arith.mulf %15, %15 : vector<16x32xf32>
    %cst_13 = arith.constant dense<0.000000e+00> : vector<16xf32>
    %17 = vector.multi_reduction <add>, %16, %cst_13 [1] : vector<16x32xf32> to vector<16xf32>
    %18 = vector.shape_cast %17 : vector<16xf32> to vector<16x1xf32>
    %cst_14 = arith.constant 3.200000e+01 : f32
    %19 = vector.broadcast %cst_14 : f32 to vector<16x1xf32>
    %20 = arith.divf %18, %19 : vector<16x1xf32>
    %21 = vector.broadcast %13 : vector<16x1xf32> to vector<16x32xf32>
    %22 = arith.subf %7, %21 : vector<16x32xf32>
    %cst_15 = arith.constant 9.99999974E-6 : f32
    %23 = vector.broadcast %cst_15 : f32 to vector<16x1xf32>
    %24 = arith.addf %20, %23 : vector<16x1xf32>
    %25 = math.rsqrt %24 : vector<16x1xf32>
    %26 = vector.broadcast %25 : vector<16x1xf32> to vector<16x32xf32>
    %27 = arith.mulf %22, %26 : vector<16x32xf32>
    %28 = vector.broadcast %8 : vector<1x32xf32> to vector<16x32xf32>
    %29 = arith.mulf %27, %28 : vector<16x32xf32>
    %30 = vector.broadcast %9 : vector<1x32xf32> to vector<16x32xf32>
    %31 = arith.addf %29, %30 : vector<16x32xf32>
    %c0_16 = arith.constant 0 : index
    %c0_17 = arith.constant 0 : index
    %32 = vector.load %arg7[%c0_16, %c0_17] : memref<16x32xf32, #tpu.memory_space<vmem>>, vector<16x32xf32>
    tpu.vector_store %arg7[%c0_16, %c0_17], %31 {strides = array<i32>} : memref<16x32xf32, #tpu.memory_space<vmem>>, vector<16x32xf32>,
    return
  }
  func.func @transform_0(%arg0: i32) -> (i32, i32) {
    %c0_i32 = arith.constant 0 : i32
    %c0_i32_0 = arith.constant 0 : i32
    return %arg0, %c0_i32 : i32, i32
  }
  func.func @transform_1(%arg0: i32) -> (i32, i32) {
    %c0_i32 = arith.constant 0 : i32
    %c0_i32_0 = arith.constant 0 : i32
    return %arg0, %c0_i32 : i32, i32
  }
  func.func @transform_2(%arg0: i32) -> (i32, i32) {
    %c0_i32 = arith.constant 0 : i32
    %c0_i32_0 = arith.constant 0 : i32
    %c0_i32_1 = arith.constant 0 : i32
    return %c0_i32, %c0_i32_0 : i32, i32
  }
  func.func @transform_3(%arg0: i32) -> (i32, i32) {
    %c0_i32 = arith.constant 0 : i32
    %c0_i32_0 = arith.constant 0 : i32
    %c0_i32_1 = arith.constant 0 : i32
    return %c0_i32, %c0_i32_0 : i32, i32
  }
  func.func @transform_4(%arg0: i32) -> (i32, i32) {
    %c0_i32 = arith.constant 0 : i32
    %c0_i32_0 = arith.constant 0 : i32
    %c0_i32_1 = arith.constant 0 : i32
    return %c0_i32, %c0_i32_0 : i32, i32
  }
  func.func @transform_5(%arg0: i32) -> (i32, i32) {
    %c0_i32 = arith.constant 0 : i32
    %c0_i32_0 = arith.constant 0 : i32
    %c0_i32_1 = arith.constant 0 : i32
    return %c0_i32, %c0_i32_0 : i32, i32
  }
  func.func @transform_6(%arg0: i32) -> (i32, i32) {
    %c0_i32 = arith.constant 0 : i32
    %c0_i32_0 = arith.constant 0 : i32
    return %arg0, %c0_i32 : i32, i32
  }
}

module attributes {stable_mosaic.version = 11 : i64} {
  func.func @_linear_kernel(%arg0: i32, %arg1: memref<16x32xf32, #tpu.memory_space<vmem>>, %arg2: memref<32x32xf32, #tpu.memory_space<vmem>>, %arg3: memref<1x32xf32, #tpu.memory_space<vmem>>, %arg4: memref<16x32xf32, #tpu.memory_space<vmem>>) attributes {dimension_semantics = [#tpu.dimension_semantics<parallel>], iteration_bounds = array<i64: 1>, scalar_prefetch = 0 : i64, scratch_operands = 0 : i64, tpu.core_type = #tpu.core_type<tc>, window_params = [{transform_indices = @transform_0, window_bounds = array<i64: 16, 32>}, {pipeline_mode = #tpu.pipeline_mode<synchronous>, transform_indices = @transform_1, window_bounds = array<i64: 32, 32>}, {pipeline_mode = #tpu.pipeline_mode<synchronous>, transform_indices = @transform_2, window_bounds = array<i64: 1, 32>}, {transform_indices = @transform_3, window_bounds = array<i64: 16, 32>}]} {
    %c0 = arith.constant 0 : index
    %c0_0 = arith.constant 0 : index
    %0 = vector.load %arg1[%c0, %c0_0] : memref<16x32xf32, #tpu.memory_space<vmem>>, vector<16x32xf32>
    %c0_1 = arith.constant 0 : index
    %c0_2 = arith.constant 0 : index
    %1 = vector.load %arg2[%c0_1, %c0_2] : memref<32x32xf32, #tpu.memory_space<vmem>>, vector<32x32xf32>
    %cst = arith.constant dense<0.000000e+00> : vector<16x32xf32>
    %2 = tpu.matmul %0, %1, %cst {dimension_numbers = #tpu.dot_dimension_numbers<[1], [0], [0], [1], [0, 0, 1, 1], [], []>} : vector<16x32xf32>, vector<32x32xf32>, vector<16x32xf32> -> vector<16x32xf32>
    %c0_3 = arith.constant 0 : index
    %c0_4 = arith.constant 0 : index
    %3 = vector.load %arg3[%c0_3, %c0_4] : memref<1x32xf32, #tpu.memory_space<vmem>>, vector<1x32xf32>
    %4 = vector.broadcast %3 : vector<1x32xf32> to vector<16x32xf32>
    %5 = arith.addf %2, %4 : vector<16x32xf32>
    %c0_5 = arith.constant 0 : index
    %c0_6 = arith.constant 0 : index
    %6 = vector.load %arg4[%c0_5, %c0_6] : memref<16x32xf32, #tpu.memory_space<vmem>>, vector<16x32xf32>
    tpu.vector_store %arg4[%c0_5, %c0_6], %5 {strides = array<i32>} : memref<16x32xf32, #tpu.memory_space<vmem>>, vector<16x32xf32>,
    return
  }
  func.func @transform_0(%arg0: i32) -> (i32, i32) {
    %c0_i32 = arith.constant 0 : i32
    %c0_i32_0 = arith.constant 0 : i32
    return %arg0, %c0_i32 : i32, i32
  }
  func.func @transform_1(%arg0: i32) -> (i32, i32) {
    %c0_i32 = arith.constant 0 : i32
    %c0_i32_0 = arith.constant 0 : i32
    %c0_i32_1 = arith.constant 0 : i32
    return %c0_i32, %c0_i32_0 : i32, i32
  }
  func.func @transform_2(%arg0: i32) -> (i32, i32) {
    %c0_i32 = arith.constant 0 : i32
    %c0_i32_0 = arith.constant 0 : i32
    %c0_i32_1 = arith.constant 0 : i32
    return %c0_i32, %c0_i32_0 : i32, i32
  }
  func.func @transform_3(%arg0: i32) -> (i32, i32) {
    %c0_i32 = arith.constant 0 : i32
    %c0_i32_0 = arith.constant 0 : i32
    return %arg0, %c0_i32 : i32, i32
  }
}

module attributes {stable_mosaic.version = 11 : i64} {
  func.func @_kv_proj_kernel(%arg0: i32, %arg1: memref<16x32xf32, #tpu.memory_space<vmem>>, %arg2: memref<32x32xf32, #tpu.memory_space<vmem>>, %arg3: memref<1x32xf32, #tpu.memory_space<vmem>>, %arg4: memref<32x32xf32, #tpu.memory_space<vmem>>, %arg5: memref<1x32xf32, #tpu.memory_space<vmem>>, %arg6: memref<16x32xf32, #tpu.memory_space<vmem>>, %arg7: memref<16x32xf32, #tpu.memory_space<vmem>>) attributes {dimension_semantics = [#tpu.dimension_semantics<parallel>], iteration_bounds = array<i64: 1>, scalar_prefetch = 0 : i64, scratch_operands = 0 : i64, tpu.core_type = #tpu.core_type<tc>, window_params = [{transform_indices = @transform_0, window_bounds = array<i64: 16, 32>}, {pipeline_mode = #tpu.pipeline_mode<synchronous>, transform_indices = @transform_1, window_bounds = array<i64: 32, 32>}, {pipeline_mode = #tpu.pipeline_mode<synchronous>, transform_indices = @transform_2, window_bounds = array<i64: 1, 32>}, {pipeline_mode = #tpu.pipeline_mode<synchronous>, transform_indices = @transform_3, window_bounds = array<i64: 32, 32>}, {pipeline_mode = #tpu.pipeline_mode<synchronous>, transform_indices = @transform_4, window_bounds = array<i64: 1, 32>}, {transform_indices = @transform_5, window_bounds = array<i64: 16, 32>}, {transform_indices = @transform_6, window_bounds = array<i64: 16, 32>}]} {
    %c0 = arith.constant 0 : index
    %c0_0 = arith.constant 0 : index
    %0 = vector.load %arg1[%c0, %c0_0] : memref<16x32xf32, #tpu.memory_space<vmem>>, vector<16x32xf32>
    %c0_1 = arith.constant 0 : index
    %c0_2 = arith.constant 0 : index
    %1 = vector.load %arg2[%c0_1, %c0_2] : memref<32x32xf32, #tpu.memory_space<vmem>>, vector<32x32xf32>
    %cst = arith.constant dense<0.000000e+00> : vector<16x32xf32>
    %2 = tpu.matmul %0, %1, %cst {dimension_numbers = #tpu.dot_dimension_numbers<[1], [0], [0], [1], [0, 0, 1, 1], [], []>} : vector<16x32xf32>, vector<32x32xf32>, vector<16x32xf32> -> vector<16x32xf32>
    %c0_3 = arith.constant 0 : index
    %c0_4 = arith.constant 0 : index
    %3 = vector.load %arg3[%c0_3, %c0_4] : memref<1x32xf32, #tpu.memory_space<vmem>>, vector<1x32xf32>
    %4 = vector.broadcast %3 : vector<1x32xf32> to vector<16x32xf32>
    %5 = arith.addf %2, %4 : vector<16x32xf32>
    %c0_5 = arith.constant 0 : index
    %c0_6 = arith.constant 0 : index
    %6 = vector.load %arg6[%c0_5, %c0_6] : memref<16x32xf32, #tpu.memory_space<vmem>>, vector<16x32xf32>
    tpu.vector_store %arg6[%c0_5, %c0_6], %5 {strides = array<i32>} : memref<16x32xf32, #tpu.memory_space<vmem>>, vector<16x32xf32>,
    %c0_7 = arith.constant 0 : index
    %c0_8 = arith.constant 0 : index
    %7 = vector.load %arg4[%c0_7, %c0_8] : memref<32x32xf32, #tpu.memory_space<vmem>>, vector<32x32xf32>
    %cst_9 = arith.constant dense<0.000000e+00> : vector<16x32xf32>
    %8 = tpu.matmul %0, %7, %cst_9 {dimension_numbers = #tpu.dot_dimension_numbers<[1], [0], [0], [1], [0, 0, 1, 1], [], []>} : vector<16x32xf32>, vector<32x32xf32>, vector<16x32xf32> -> vector<16x32xf32>
    %c0_10 = arith.constant 0 : index
    %c0_11 = arith.constant 0 : index
    %9 = vector.load %arg5[%c0_10, %c0_11] : memref<1x32xf32, #tpu.memory_space<vmem>>, vector<1x32xf32>
    %10 = vector.broadcast %9 : vector<1x32xf32> to vector<16x32xf32>
    %11 = arith.addf %8, %10 : vector<16x32xf32>
    %c0_12 = arith.constant 0 : index
    %c0_13 = arith.constant 0 : index
    %12 = vector.load %arg7[%c0_12, %c0_13] : memref<16x32xf32, #tpu.memory_space<vmem>>, vector<16x32xf32>
    tpu.vector_store %arg7[%c0_12, %c0_13], %11 {strides = array<i32>} : memref<16x32xf32, #tpu.memory_space<vmem>>, vector<16x32xf32>,
    return
  }
  func.func @transform_0(%arg0: i32) -> (i32, i32) {
    %c0_i32 = arith.constant 0 : i32
    %c0_i32_0 = arith.constant 0 : i32
    return %arg0, %c0_i32 : i32, i32
  }
  func.func @transform_1(%arg0: i32) -> (i32, i32) {
    %c0_i32 = arith.constant 0 : i32
    %c0_i32_0 = arith.constant 0 : i32
    %c0_i32_1 = arith.constant 0 : i32
    return %c0_i32, %c0_i32_0 : i32, i32
  }
  func.func @transform_2(%arg0: i32) -> (i32, i32) {
    %c0_i32 = arith.constant 0 : i32
    %c0_i32_0 = arith.constant 0 : i32
    %c0_i32_1 = arith.constant 0 : i32
    return %c0_i32, %c0_i32_0 : i32, i32
  }
  func.func @transform_3(%arg0: i32) -> (i32, i32) {
    %c0_i32 = arith.constant 0 : i32
    %c0_i32_0 = arith.constant 0 : i32
    %c0_i32_1 = arith.constant 0 : i32
    return %c0_i32, %c0_i32_0 : i32, i32
  }
  func.func @transform_4(%arg0: i32) -> (i32, i32) {
    %c0_i32 = arith.constant 0 : i32
    %c0_i32_0 = arith.constant 0 : i32
    %c0_i32_1 = arith.constant 0 : i32
    return %c0_i32, %c0_i32_0 : i32, i32
  }
  func.func @transform_5(%arg0: i32) -> (i32, i32) {
    %c0_i32 = arith.constant 0 : i32
    %c0_i32_0 = arith.constant 0 : i32
    return %arg0, %c0_i32 : i32, i32
  }
  func.func @transform_6(%arg0: i32) -> (i32, i32) {
    %c0_i32 = arith.constant 0 : i32
    %c0_i32_0 = arith.constant 0 : i32
    return %arg0, %c0_i32 : i32, i32
  }
}

module attributes {stable_mosaic.version = 11 : i64} {
  func.func @_oproj_gate_ln_kernel(%arg0: i32, %arg1: memref<16x32xf32, #tpu.memory_space<vmem>>, %arg2: memref<16x32xf32, #tpu.memory_space<vmem>>, %arg3: memref<32x32xf32, #tpu.memory_space<vmem>>, %arg4: memref<1x32xf32, #tpu.memory_space<vmem>>, %arg5: memref<32x32xf32, #tpu.memory_space<vmem>>, %arg6: memref<1x32xf32, #tpu.memory_space<vmem>>, %arg7: memref<32x32xf32, #tpu.memory_space<vmem>>, %arg8: memref<1x32xf32, #tpu.memory_space<vmem>>, %arg9: memref<1x32xf32, #tpu.memory_space<vmem>>, %arg10: memref<1x32xf32, #tpu.memory_space<vmem>>, %arg11: memref<16x32xf32, #tpu.memory_space<vmem>>) attributes {dimension_semantics = [#tpu.dimension_semantics<parallel>], iteration_bounds = array<i64: 1>, scalar_prefetch = 0 : i64, scratch_operands = 0 : i64, tpu.core_type = #tpu.core_type<tc>, window_params = [{transform_indices = @transform_0, window_bounds = array<i64: 16, 32>}, {transform_indices = @transform_1, window_bounds = array<i64: 16, 32>}, {pipeline_mode = #tpu.pipeline_mode<synchronous>, transform_indices = @transform_2, window_bounds = array<i64: 32, 32>}, {pipeline_mode = #tpu.pipeline_mode<synchronous>, transform_indices = @transform_3, window_bounds = array<i64: 1, 32>}, {pipeline_mode = #tpu.pipeline_mode<synchronous>, transform_indices = @transform_4, window_bounds = array<i64: 32, 32>}, {pipeline_mode = #tpu.pipeline_mode<synchronous>, transform_indices = @transform_5, window_bounds = array<i64: 1, 32>}, {pipeline_mode = #tpu.pipeline_mode<synchronous>, transform_indices = @transform_6, window_bounds = array<i64: 32, 32>}, {pipeline_mode = #tpu.pipeline_mode<synchronous>, transform_indices = @transform_7, window_bounds = array<i64: 1, 32>}, {pipeline_mode = #tpu.pipeline_mode<synchronous>, transform_indices = @transform_8, window_bounds = array<i64: 1, 32>}, {pipeline_mode = #tpu.pipeline_mode<synchronous>, transform_indices = @transform_9, window_bounds = array<i64: 1, 32>}, {transform_indices = @transform_10, window_bounds = array<i64: 16, 32>}]} {
    %c0 = arith.constant 0 : index
    %c0_0 = arith.constant 0 : index
    %0 = vector.load %arg1[%c0, %c0_0] : memref<16x32xf32, #tpu.memory_space<vmem>>, vector<16x32xf32>
    %c0_1 = arith.constant 0 : index
    %c0_2 = arith.constant 0 : index
    %1 = vector.load %arg3[%c0_1, %c0_2] : memref<32x32xf32, #tpu.memory_space<vmem>>, vector<32x32xf32>
    %cst = arith.constant dense<0.000000e+00> : vector<16x32xf32>
    %2 = tpu.matmul %0, %1, %cst {dimension_numbers = #tpu.dot_dimension_numbers<[1], [0], [0], [1], [0, 0, 1, 1], [], []>} : vector<16x32xf32>, vector<32x32xf32>, vector<16x32xf32> -> vector<16x32xf32>
    %c0_3 = arith.constant 0 : index
    %c0_4 = arith.constant 0 : index
    %3 = vector.load %arg4[%c0_3, %c0_4] : memref<1x32xf32, #tpu.memory_space<vmem>>, vector<1x32xf32>
    %4 = vector.broadcast %3 : vector<1x32xf32> to vector<16x32xf32>
    %5 = arith.addf %2, %4 : vector<16x32xf32>
    %c0_5 = arith.constant 0 : index
    %c0_6 = arith.constant 0 : index
    %6 = vector.load %arg2[%c0_5, %c0_6] : memref<16x32xf32, #tpu.memory_space<vmem>>, vector<16x32xf32>
    %c0_7 = arith.constant 0 : index
    %c0_8 = arith.constant 0 : index
    %7 = vector.load %arg5[%c0_7, %c0_8] : memref<32x32xf32, #tpu.memory_space<vmem>>, vector<32x32xf32>
    %cst_9 = arith.constant dense<0.000000e+00> : vector<16x32xf32>
    %8 = tpu.matmul %6, %7, %cst_9 {dimension_numbers = #tpu.dot_dimension_numbers<[1], [0], [0], [1], [0, 0, 1, 1], [], []>} : vector<16x32xf32>, vector<32x32xf32>, vector<16x32xf32> -> vector<16x32xf32>
    %c0_10 = arith.constant 0 : index
    %c0_11 = arith.constant 0 : index
    %9 = vector.load %arg6[%c0_10, %c0_11] : memref<1x32xf32, #tpu.memory_space<vmem>>, vector<1x32xf32>
    %10 = vector.broadcast %9 : vector<1x32xf32> to vector<16x32xf32>
    %11 = arith.addf %8, %10 : vector<16x32xf32>
    %c0_12 = arith.constant 0 : index
    %c0_13 = arith.constant 0 : index
    %12 = vector.load %arg7[%c0_12, %c0_13] : memref<32x32xf32, #tpu.memory_space<vmem>>, vector<32x32xf32>
    %cst_14 = arith.constant dense<0.000000e+00> : vector<16x32xf32>
    %13 = tpu.matmul %5, %12, %cst_14 {dimension_numbers = #tpu.dot_dimension_numbers<[1], [0], [0], [1], [0, 0, 1, 1], [], []>} : vector<16x32xf32>, vector<32x32xf32>, vector<16x32xf32> -> vector<16x32xf32>
    %c0_15 = arith.constant 0 : index
    %c0_16 = arith.constant 0 : index
    %14 = vector.load %arg8[%c0_15, %c0_16] : memref<1x32xf32, #tpu.memory_space<vmem>>, vector<1x32xf32>
    %15 = vector.broadcast %14 : vector<1x32xf32> to vector<16x32xf32>
    %16 = arith.addf %13, %15 : vector<16x32xf32>
    %17 = arith.addf %11, %16 : vector<16x32xf32>
    %18 = arith.negf %17 : vector<16x32xf32>
    %19 = math.exp %18 : vector<16x32xf32>
    %cst_17 = arith.constant 1.000000e+00 : f32
    %20 = vector.broadcast %cst_17 : f32 to vector<16x32xf32>
    %21 = arith.addf %20, %19 : vector<16x32xf32>
    %22 = arith.divf %20, %21 : vector<16x32xf32>
    %23 = arith.mulf %22, %6 : vector<16x32xf32>
    %cst_18 = arith.constant 1.000000e+00 : f32
    %24 = vector.broadcast %cst_18 : f32 to vector<16x32xf32>
    %25 = arith.subf %24, %22 : vector<16x32xf32>
    %26 = arith.mulf %25, %5 : vector<16x32xf32>
    %27 = arith.addf %23, %26 : vector<16x32xf32>
    %c0_19 = arith.constant 0 : index
    %c0_20 = arith.constant 0 : index
    %28 = vector.load %arg9[%c0_19, %c0_20] : memref<1x32xf32, #tpu.memory_space<vmem>>, vector<1x32xf32>
    %c0_21 = arith.constant 0 : index
    %c0_22 = arith.constant 0 : index
    %29 = vector.load %arg10[%c0_21, %c0_22] : memref<1x32xf32, #tpu.memory_space<vmem>>, vector<1x32xf32>
    %cst_23 = arith.constant dense<0.000000e+00> : vector<16xf32>
    %30 = vector.multi_reduction <add>, %27, %cst_23 [1] : vector<16x32xf32> to vector<16xf32>
    %31 = vector.shape_cast %30 : vector<16xf32> to vector<16x1xf32>
    %cst_24 = arith.constant 3.200000e+01 : f32
    %32 = vector.broadcast %cst_24 : f32 to vector<16x1xf32>
    %33 = arith.divf %31, %32 : vector<16x1xf32>
    %34 = vector.broadcast %33 : vector<16x1xf32> to vector<16x32xf32>
    %35 = arith.subf %27, %34 : vector<16x32xf32>
    %36 = arith.mulf %35, %35 : vector<16x32xf32>
    %cst_25 = arith.constant dense<0.000000e+00> : vector<16xf32>
    %37 = vector.multi_reduction <add>, %36, %cst_25 [1] : vector<16x32xf32> to vector<16xf32>
    %38 = vector.shape_cast %37 : vector<16xf32> to vector<16x1xf32>
    %cst_26 = arith.constant 3.200000e+01 : f32
    %39 = vector.broadcast %cst_26 : f32 to vector<16x1xf32>
    %40 = arith.divf %38, %39 : vector<16x1xf32>
    %41 = vector.broadcast %33 : vector<16x1xf32> to vector<16x32xf32>
    %42 = arith.subf %27, %41 : vector<16x32xf32>
    %cst_27 = arith.constant 9.99999974E-6 : f32
    %43 = vector.broadcast %cst_27 : f32 to vector<16x1xf32>
    %44 = arith.addf %40, %43 : vector<16x1xf32>
    %45 = math.rsqrt %44 : vector<16x1xf32>
    %46 = vector.broadcast %45 : vector<16x1xf32> to vector<16x32xf32>
    %47 = arith.mulf %42, %46 : vector<16x32xf32>
    %48 = vector.broadcast %28 : vector<1x32xf32> to vector<16x32xf32>
    %49 = arith.mulf %47, %48 : vector<16x32xf32>
    %50 = vector.broadcast %29 : vector<1x32xf32> to vector<16x32xf32>
    %51 = arith.addf %49, %50 : vector<16x32xf32>
    %c0_28 = arith.constant 0 : index
    %c0_29 = arith.constant 0 : index
    %52 = vector.load %arg11[%c0_28, %c0_29] : memref<16x32xf32, #tpu.memory_space<vmem>>, vector<16x32xf32>
    tpu.vector_store %arg11[%c0_28, %c0_29], %51 {strides = array<i32>} : memref<16x32xf32, #tpu.memory_space<vmem>>, vector<16x32xf32>,
    return
  }
  func.func @transform_0(%arg0: i32) -> (i32, i32) {
    %c0_i32 = arith.constant 0 : i32
    %c0_i32_0 = arith.constant 0 : i32
    return %arg0, %c0_i32 : i32, i32
  }
  func.func @transform_1(%arg0: i32) -> (i32, i32) {
    %c0_i32 = arith.constant 0 : i32
    %c0_i32_0 = arith.constant 0 : i32
    return %arg0, %c0_i32 : i32, i32
  }
  func.func @transform_2(%arg0: i32) -> (i32, i32) {
    %c0_i32 = arith.constant 0 : i32
    %c0_i32_0 = arith.constant 0 : i32
    %c0_i32_1 = arith.constant 0 : i32
    return %c0_i32, %c0_i32_0 : i32, i32
  }
  func.func @transform_3(%arg0: i32) -> (i32, i32) {
    %c0_i32 = arith.constant 0 : i32
    %c0_i32_0 = arith.constant 0 : i32
    %c0_i32_1 = arith.constant 0 : i32
    return %c0_i32, %c0_i32_0 : i32, i32
  }
  func.func @transform_4(%arg0: i32) -> (i32, i32) {
    %c0_i32 = arith.constant 0 : i32
    %c0_i32_0 = arith.constant 0 : i32
    %c0_i32_1 = arith.constant 0 : i32
    return %c0_i32, %c0_i32_0 : i32, i32
  }
  func.func @transform_5(%arg0: i32) -> (i32, i32) {
    %c0_i32 = arith.constant 0 : i32
    %c0_i32_0 = arith.constant 0 : i32
    %c0_i32_1 = arith.constant 0 : i32
    return %c0_i32, %c0_i32_0 : i32, i32
  }
  func.func @transform_6(%arg0: i32) -> (i32, i32) {
    %c0_i32 = arith.constant 0 : i32
    %c0_i32_0 = arith.constant 0 : i32
    %c0_i32_1 = arith.constant 0 : i32
    return %c0_i32, %c0_i32_0 : i32, i32
  }
  func.func @transform_7(%arg0: i32) -> (i32, i32) {
    %c0_i32 = arith.constant 0 : i32
    %c0_i32_0 = arith.constant 0 : i32
    %c0_i32_1 = arith.constant 0 : i32
    return %c0_i32, %c0_i32_0 : i32, i32
  }
  func.func @transform_8(%arg0: i32) -> (i32, i32) {
    %c0_i32 = arith.constant 0 : i32
    %c0_i32_0 = arith.constant 0 : i32
    %c0_i32_1 = arith.constant 0 : i32
    return %c0_i32, %c0_i32_0 : i32, i32
  }
  func.func @transform_9(%arg0: i32) -> (i32, i32) {
    %c0_i32 = arith.constant 0 : i32
    %c0_i32_0 = arith.constant 0 : i32
    %c0_i32_1 = arith.constant 0 : i32
    return %c0_i32, %c0_i32_0 : i32, i32
  }
  func.func @transform_10(%arg0: i32) -> (i32, i32) {
    %c0_i32 = arith.constant 0 : i32
    %c0_i32_0 = arith.constant 0 : i32
    return %arg0, %c0_i32 : i32, i32
  }
}

module attributes {stable_mosaic.version = 11 : i64} {
  func.func @_ffn_ln_kernel(%arg0: i32, %arg1: memref<16x32xf32, #tpu.memory_space<vmem>>, %arg2: memref<32x64xf32, #tpu.memory_space<vmem>>, %arg3: memref<1x64xf32, #tpu.memory_space<vmem>>, %arg4: memref<64x32xf32, #tpu.memory_space<vmem>>, %arg5: memref<1x32xf32, #tpu.memory_space<vmem>>, %arg6: memref<1x32xf32, #tpu.memory_space<vmem>>, %arg7: memref<1x32xf32, #tpu.memory_space<vmem>>, %arg8: memref<16x32xf32, #tpu.memory_space<vmem>>) attributes {dimension_semantics = [#tpu.dimension_semantics<parallel>], iteration_bounds = array<i64: 1>, scalar_prefetch = 0 : i64, scratch_operands = 0 : i64, tpu.core_type = #tpu.core_type<tc>, window_params = [{transform_indices = @transform_0, window_bounds = array<i64: 16, 32>}, {pipeline_mode = #tpu.pipeline_mode<synchronous>, transform_indices = @transform_1, window_bounds = array<i64: 32, 64>}, {pipeline_mode = #tpu.pipeline_mode<synchronous>, transform_indices = @transform_2, window_bounds = array<i64: 1, 64>}, {pipeline_mode = #tpu.pipeline_mode<synchronous>, transform_indices = @transform_3, window_bounds = array<i64: 64, 32>}, {pipeline_mode = #tpu.pipeline_mode<synchronous>, transform_indices = @transform_4, window_bounds = array<i64: 1, 32>}, {pipeline_mode = #tpu.pipeline_mode<synchronous>, transform_indices = @transform_5, window_bounds = array<i64: 1, 32>}, {pipeline_mode = #tpu.pipeline_mode<synchronous>, transform_indices = @transform_6, window_bounds = array<i64: 1, 32>}, {transform_indices = @transform_7, window_bounds = array<i64: 16, 32>}]} {
    %c0 = arith.constant 0 : index
    %c0_0 = arith.constant 0 : index
    %0 = vector.load %arg1[%c0, %c0_0] : memref<16x32xf32, #tpu.memory_space<vmem>>, vector<16x32xf32>
    %c0_1 = arith.constant 0 : index
    %c0_2 = arith.constant 0 : index
    %1 = vector.load %arg2[%c0_1, %c0_2] : memref<32x64xf32, #tpu.memory_space<vmem>>, vector<32x64xf32>
    %cst = arith.constant dense<0.000000e+00> : vector<16x64xf32>
    %2 = tpu.matmul %0, %1, %cst {dimension_numbers = #tpu.dot_dimension_numbers<[1], [0], [0], [1], [0, 0, 1, 1], [], []>} : vector<16x32xf32>, vector<32x64xf32>, vector<16x64xf32> -> vector<16x64xf32>
    %c0_3 = arith.constant 0 : index
    %c0_4 = arith.constant 0 : index
    %3 = vector.load %arg3[%c0_3, %c0_4] : memref<1x64xf32, #tpu.memory_space<vmem>>, vector<1x64xf32>
    %4 = vector.broadcast %3 : vector<1x64xf32> to vector<16x64xf32>
    %5 = arith.addf %2, %4 : vector<16x64xf32>
    %cst_5 = arith.constant 0.000000e+00 : f32
    %6 = vector.broadcast %cst_5 : f32 to vector<16x64xf32>
    %7 = arith.maximumf %5, %6 : vector<16x64xf32>
    %c0_6 = arith.constant 0 : index
    %c0_7 = arith.constant 0 : index
    %8 = vector.load %arg4[%c0_6, %c0_7] : memref<64x32xf32, #tpu.memory_space<vmem>>, vector<64x32xf32>
    %cst_8 = arith.constant dense<0.000000e+00> : vector<16x32xf32>
    %9 = tpu.matmul %7, %8, %cst_8 {dimension_numbers = #tpu.dot_dimension_numbers<[1], [0], [0], [1], [0, 0, 1, 1], [], []>} : vector<16x64xf32>, vector<64x32xf32>, vector<16x32xf32> -> vector<16x32xf32>
    %c0_9 = arith.constant 0 : index
    %c0_10 = arith.constant 0 : index
    %10 = vector.load %arg5[%c0_9, %c0_10] : memref<1x32xf32, #tpu.memory_space<vmem>>, vector<1x32xf32>
    %11 = vector.broadcast %10 : vector<1x32xf32> to vector<16x32xf32>
    %12 = arith.addf %9, %11 : vector<16x32xf32>
    %13 = arith.addf %0, %12 : vector<16x32xf32>
    %c0_11 = arith.constant 0 : index
    %c0_12 = arith.constant 0 : index
    %14 = vector.load %arg6[%c0_11, %c0_12] : memref<1x32xf32, #tpu.memory_space<vmem>>, vector<1x32xf32>
    %c0_13 = arith.constant 0 : index
    %c0_14 = arith.constant 0 : index
    %15 = vector.load %arg7[%c0_13, %c0_14] : memref<1x32xf32, #tpu.memory_space<vmem>>, vector<1x32xf32>
    %cst_15 = arith.constant dense<0.000000e+00> : vector<16xf32>
    %16 = vector.multi_reduction <add>, %13, %cst_15 [1] : vector<16x32xf32> to vector<16xf32>
    %17 = vector.shape_cast %16 : vector<16xf32> to vector<16x1xf32>
    %cst_16 = arith.constant 3.200000e+01 : f32
    %18 = vector.broadcast %cst_16 : f32 to vector<16x1xf32>
    %19 = arith.divf %17, %18 : vector<16x1xf32>
    %20 = vector.broadcast %19 : vector<16x1xf32> to vector<16x32xf32>
    %21 = arith.subf %13, %20 : vector<16x32xf32>
    %22 = arith.mulf %21, %21 : vector<16x32xf32>
    %cst_17 = arith.constant dense<0.000000e+00> : vector<16xf32>
    %23 = vector.multi_reduction <add>, %22, %cst_17 [1] : vector<16x32xf32> to vector<16xf32>
    %24 = vector.shape_cast %23 : vector<16xf32> to vector<16x1xf32>
    %cst_18 = arith.constant 3.200000e+01 : f32
    %25 = vector.broadcast %cst_18 : f32 to vector<16x1xf32>
    %26 = arith.divf %24, %25 : vector<16x1xf32>
    %27 = vector.broadcast %19 : vector<16x1xf32> to vector<16x32xf32>
    %28 = arith.subf %13, %27 : vector<16x32xf32>
    %cst_19 = arith.constant 9.99999974E-6 : f32
    %29 = vector.broadcast %cst_19 : f32 to vector<16x1xf32>
    %30 = arith.addf %26, %29 : vector<16x1xf32>
    %31 = math.rsqrt %30 : vector<16x1xf32>
    %32 = vector.broadcast %31 : vector<16x1xf32> to vector<16x32xf32>
    %33 = arith.mulf %28, %32 : vector<16x32xf32>
    %34 = vector.broadcast %14 : vector<1x32xf32> to vector<16x32xf32>
    %35 = arith.mulf %33, %34 : vector<16x32xf32>
    %36 = vector.broadcast %15 : vector<1x32xf32> to vector<16x32xf32>
    %37 = arith.addf %35, %36 : vector<16x32xf32>
    %c0_20 = arith.constant 0 : index
    %c0_21 = arith.constant 0 : index
    %38 = vector.load %arg8[%c0_20, %c0_21] : memref<16x32xf32, #tpu.memory_space<vmem>>, vector<16x32xf32>
    tpu.vector_store %arg8[%c0_20, %c0_21], %37 {strides = array<i32>} : memref<16x32xf32, #tpu.memory_space<vmem>>, vector<16x32xf32>,
    return
  }
  func.func @transform_0(%arg0: i32) -> (i32, i32) {
    %c0_i32 = arith.constant 0 : i32
    %c0_i32_0 = arith.constant 0 : i32
    return %arg0, %c0_i32 : i32, i32
  }
  func.func @transform_1(%arg0: i32) -> (i32, i32) {
    %c0_i32 = arith.constant 0 : i32
    %c0_i32_0 = arith.constant 0 : i32
    %c0_i32_1 = arith.constant 0 : i32
    return %c0_i32, %c0_i32_0 : i32, i32
  }
  func.func @transform_2(%arg0: i32) -> (i32, i32) {
    %c0_i32 = arith.constant 0 : i32
    %c0_i32_0 = arith.constant 0 : i32
    %c0_i32_1 = arith.constant 0 : i32
    return %c0_i32, %c0_i32_0 : i32, i32
  }
  func.func @transform_3(%arg0: i32) -> (i32, i32) {
    %c0_i32 = arith.constant 0 : i32
    %c0_i32_0 = arith.constant 0 : i32
    %c0_i32_1 = arith.constant 0 : i32
    return %c0_i32, %c0_i32_0 : i32, i32
  }
  func.func @transform_4(%arg0: i32) -> (i32, i32) {
    %c0_i32 = arith.constant 0 : i32
    %c0_i32_0 = arith.constant 0 : i32
    %c0_i32_1 = arith.constant 0 : i32
    return %c0_i32, %c0_i32_0 : i32, i32
  }
  func.func @transform_5(%arg0: i32) -> (i32, i32) {
    %c0_i32 = arith.constant 0 : i32
    %c0_i32_0 = arith.constant 0 : i32
    %c0_i32_1 = arith.constant 0 : i32
    return %c0_i32, %c0_i32_0 : i32, i32
  }
  func.func @transform_6(%arg0: i32) -> (i32, i32) {
    %c0_i32 = arith.constant 0 : i32
    %c0_i32_0 = arith.constant 0 : i32
    %c0_i32_1 = arith.constant 0 : i32
    return %c0_i32, %c0_i32_0 : i32, i32
  }
  func.func @transform_7(%arg0: i32) -> (i32, i32) {
    %c0_i32 = arith.constant 0 : i32
    %c0_i32_0 = arith.constant 0 : i32
    return %arg0, %c0_i32 : i32, i32
  }
}

</mosaic_0001>

<llo_original>
// kernel: decoder_layer_forward.11
$region0: #{decoder_layer_forward.11}
  #allocation0 [shape = 'u32[]', space=smem, size = 0x4, offset = 0x4, fixed_abs, tag = 'smem constant byte address 0x4 - core index']
  #allocation1 [shape = 'u32[72,128]{1,0:T(1,128)}', space=vmem, size = 0x9000, scoped, tag = 'internal scratch']
  %s0 = inlined_call_operand.vmem [shape: f32[16,32], index: 0, kind: input, shape index: {}]
  %s1 = inlined_call_operand.vmem [shape: f32[32,32], index: 1, kind: input, shape index: {}]
  %s2 = inlined_call_operand.vmem [shape: f32[1,32], index: 2, kind: input, shape index: {}]
  %s3 = inlined_call_operand.vmem [shape: f32[16,32], index: 3, kind: output, shape index: {}]
  %s4 = sld [smem:[#allocation0]]
  $region22: #{decoder_layer_forward.11} parent=0
    _
  %s6 = ssub.s32 1, %s4
  %s7 = scalar_select 0, %s6, %s4
  // Predicated region
  $region2: #{decoder_layer_forward.11} parent=0 // pred_check
    _
  $region3: #{decoder_layer_forward.11} parent=0 // pred_check_branch
    %9 = sbr.rel (0) target = $region5
  $region4: #{decoder_layer_forward.11} parent=0 // pred_region
    _
  $region5: #{decoder_layer_forward.11} parent=0 // pred_fallthru
    _
  // Predicated region
  $region6: #{decoder_layer_forward.11} parent=0 // pred_check
    _
  $region7: #{decoder_layer_forward.11} parent=0 // pred_check_branch
    %11 = sbr.rel (0) target = $region9
  $region8: #{decoder_layer_forward.11} parent=0 // pred_region
    _
  $region9: #{decoder_layer_forward.11} parent=0 // pred_fallthru
    _
  // Predicated region
  $region10: #{decoder_layer_forward.11} parent=0 // pred_check
    _
  $region11: #{decoder_layer_forward.11} parent=0 // pred_check_branch
    %13 = sbr.rel (0) target = $region13
  $region12: #{decoder_layer_forward.11} parent=0 // pred_region
    _
  $region13: #{decoder_layer_forward.11} parent=0 // pred_fallthru
    _
  %v14 = vld [vmem:[%s0] sm:$0xff]
  %v15 = vld [vmem:[%s0 + $0x8] sm:$0xff]
  %v16 = vld [vmem:[%s1] sm:$0xff]
  %v17 = vld [vmem:[%s1 + $0x8] sm:$0xff]
  %v18 = vld [vmem:[%s1 + $0x10] sm:$0xff]
  %v19 = vld [vmem:[%s1 + $0x18] sm:$0xff]
  %v20 = vld [vmem:[%s2] sm:$0x1]
  %v22 = vperm.slane %v20, 0
  %vm24 = vcmask 261120
  %v26 = vsel %vm24, %v14, 0
  %v29 = vsel %vm24, %v15, 0
  %31 = vmatpush.msra.mxu0 0.0
  %32 = vmatpush.msra.mxu0 0.0
  %33 = vmatpush.msra.mxu0 0.0
  %34 = vmatpush.msra.mxu0 0.0
  %35 = vmatpush.msra.mxu0 0.0
  %36 = vmatpush.msra.mxu0 0.0
  %37 = vmatpush.msra.mxu0 0.0
  %38 = vmatpush.msra.mxu0 0.0
  %39 = vmatpush.msra.mxu0 0.0
  %40 = vmatpush.msra.mxu0 0.0
  %41 = vmatpush.msra.mxu0 0.0
  %42 = vmatpush.msra.mxu0 0.0
  %43 = vmatpush.msra.mxu0 %v19
  %44 = vmatpush.msra.mxu0 %v18
  %45 = vmatpush.msra.mxu0 %v17
  %46 = vmatpush.msra.mxu0 %v16
  %47 = vmatmul.f32.gmra.mxu0 %v26
  %v48 = vpop.f32.mrf.mxu0
  %v49 = vadd.f32 %v22, %v48
  %50 = vmatmul.f32.gmra.mxu0 %v29
  %v51 = vpop.f32.mrf.mxu0
  %v52 = vadd.f32 %v22, %v51
  %53 = vdwg.mxu0
  %54 = vst.msk [vmem:[%s3] sm:$0xff] %vm24, %v49
  %55 = vst.msk [vmem:[%s3 + $0x8] sm:$0xff] %vm24, %v52
  // Predicated region
  $region14: #{decoder_layer_forward.11} parent=0 // pred_check
    _
  $region15: #{decoder_layer_forward.11} parent=0 // pred_check_branch
    %57 = sbr.rel (0) target = $region17
  $region16: #{decoder_layer_forward.11} parent=0 // pred_region
    _
  $region17: #{decoder_layer_forward.11} parent=0 // pred_fallthru
    _
  // Predicated region
  $region18: #{decoder_layer_forward.11} parent=0 // pred_check
    _
  $region19: #{decoder_layer_forward.11} parent=0 // pred_check_branch
    %59 = sbr.rel (0) target = $region21
  $region20: #{decoder_layer_forward.11} parent=0 // pred_region
    _
  $region21: #{decoder_layer_forward.11} parent=0 // pred_fallthru
    _

// kernel: decoder_layer_forward.10
$region0: #{decoder_layer_forward.10}
  #allocation0 [shape = 'u32[]', space=smem, size = 0x4, offset = 0x4, fixed_abs, tag = 'smem constant byte address 0x4 - core index']
  #allocation1 [shape = 'u32[72,128]{1,0:T(1,128)}', space=vmem, size = 0x9000, scoped, tag = 'internal scratch']
  %s0 = inlined_call_operand.vmem [shape: f32[16,32], index: 0, kind: input, shape index: {}]
  %s1 = inlined_call_operand.vmem [shape: f32[16,32], index: 1, kind: input, shape index: {}]
  %s2 = inlined_call_operand.hbm [shape: f32[32,32], index: 2, kind: input, shape index: {}]
  %s3 = inlined_call_operand.vmem [shape: f32[1,32], index: 3, kind: input, shape index: {}]
  %s4 = inlined_call_operand.vmem [shape: f32[1,32], index: 4, kind: input, shape index: {}]
  %s5 = inlined_call_operand.vmem [shape: f32[1,32], index: 5, kind: input, shape index: {}]
  %s6 = inlined_call_operand.vmem [shape: f32[16,32], index: 6, kind: output, shape index: {}]
  %s7 = sld [smem:[#allocation0]]
  $region38: #{decoder_layer_forward.10} parent=0
    _
  %s9 = ssub.s32 1, %s7
  %s10 = scalar_select 0, %s9, %s7
  $region1: #{decoder_layer_forward.10} parent=0
    #allocation2 [shape = 'u8[16384]{0}', space=vmem, size = 0x4000, scoped, tag = 'input window, operand 2, single buffered']
    #allocation3 [shape = 's32[1]{0}', space=sflag, size = 0x4, scoped, tag = 'scoped memory for decoder_layer_forward.10']
    %11 = vsyncpa [#allocation3], 0
    // Predicated region
    $region2: #{decoder_layer_forward.10} parent=1 // pred_check
      _
    $region3: #{decoder_layer_forward.10} parent=1 // pred_check_branch
      %13 = sbr.rel (0) target = $region5
    $region4: #{decoder_layer_forward.10} parent=1 // pred_region
      _
    $region5: #{decoder_layer_forward.10} parent=1 // pred_fallthru
      _
    // Predicated region
    $region6: #{decoder_layer_forward.10} parent=1 // pred_check
      _
    $region7: #{decoder_layer_forward.10} parent=1 // pred_check_branch
      %15 = sbr.rel (0) target = $region9
    $region8: #{decoder_layer_forward.10} parent=1 // pred_region
      _
    $region9: #{decoder_layer_forward.10} parent=1 // pred_fallthru
      _
    // Predicated region
    $region10: #{decoder_layer_forward.10} parent=1 // pred_check
      _
    $region11: #{decoder_layer_forward.10} parent=1 // pred_check_branch
      %17 = sbr.rel (0) target = $region13
    $region12: #{decoder_layer_forward.10} parent=1 // pred_region
      %19 = vsyncadd [#allocation3], 0
      %s20 = sshll.u32 %s2, 4
      %s21 = int_to_ptr.hbm [resolvable:$true] %s20
      %s22 = sshll.u32 [#allocation2], 4
      %s23 = int_to_ptr.vmem [resolvable:$true] %s22
      %28 = dma.hbm_to_vmem [thread:$0]  %s21, 512, %s23, [#allocation3], 128, 128, 8
    $region13: #{decoder_layer_forward.10} parent=1 // pred_fallthru
      _
    // Predicated region
    $region14: #{decoder_layer_forward.10} parent=1 // pred_check
      _
    $region15: #{decoder_layer_forward.10} parent=1 // pred_check_branch
      %30 = sbr.rel (0) target = $region17
    $region16: #{decoder_layer_forward.10} parent=1 // pred_region
      _
    $region17: #{decoder_layer_forward.10} parent=1 // pred_fallthru
      _
    // Predicated region
    $region18: #{decoder_layer_forward.10} parent=1 // pred_check
      _
    $region19: #{decoder_layer_forward.10} parent=1 // pred_check_branch
      %32 = sbr.rel (0) target = $region21
    $region20: #{decoder_layer_forward.10} parent=1 // pred_region
      _
    $region21: #{decoder_layer_forward.10} parent=1 // pred_fallthru
      _
    // Predicated region
    $region22: #{decoder_layer_forward.10} parent=1 // pred_check
      _
    $region23: #{decoder_layer_forward.10} parent=1 // pred_check_branch
      %34 = sbr.rel (0) target = $region25
    $region24: #{decoder_layer_forward.10} parent=1 // pred_region
      _
    $region25: #{decoder_layer_forward.10} parent=1 // pred_fallthru
      _
    // Predicated region
    $region26: #{decoder_layer_forward.10} parent=1 // pred_check
      _
    $region27: #{decoder_layer_forward.10} parent=1 // pred_check_branch
      %36 = sbr.rel (0) target = $region29
    $region28: #{decoder_layer_forward.10} parent=1 // pred_region
      %38 = dma.done [#allocation3], 512
    $region29: #{decoder_layer_forward.10} parent=1 // pred_fallthru
      _
    %v39 = vld [vmem:[%s0] sm:$0xff]
    %v40 = vld [vmem:[%s0 + $0x8] sm:$0xff]
    %v41 = vld [vmem:[#allocation2] sm:$0xff]
    %v42 = vld [vmem:[#allocation2 + $0x8] sm:$0xff]
    %v43 = vld [vmem:[#allocation2 + $0x10] sm:$0xff]
    %v44 = vld [vmem:[#allocation2 + $0x18] sm:$0xff]
    %v45 = vld [vmem:[%s3] sm:$0x1]
    %v47 = vperm.slane %v45, 0
    %vm49 = vcmask 261120
    %v51 = vsel %vm49, %v39, 0
    %v54 = vsel %vm49, %v40, 0
    %56 = vmatpush.msra.mxu0 0.0
    %57 = vmatpush.msra.mxu0 0.0
    %58 = vmatpush.msra.mxu0 0.0
    %59 = vmatpush.msra.mxu0 0.0
    %60 = vmatpush.msra.mxu0 0.0
    %61 = vmatpush.msra.mxu0 0.0
    %62 = vmatpush.msra.mxu0 0.0
    %63 = vmatpush.msra.mxu0 0.0
    %64 = vmatpush.msra.mxu0 0.0
    %65 = vmatpush.msra.mxu0 0.0
    %66 = vmatpush.msra.mxu0 0.0
    %67 = vmatpush.msra.mxu0 0.0
    %68 = vmatpush.msra.mxu0 %v44
    %69 = vmatpush.msra.mxu0 %v43
    %70 = vmatpush.msra.mxu0 %v42
    %71 = vmatpush.msra.mxu0 %v41
    %72 = vmatmul.f32.gmra.mxu0 %v51
    %v73 = vpop.f32.mrf.mxu0
    %v74 = vadd.f32 %v47, %v73
    %75 = vmatmul.f32.gmra.mxu0 %v54
    %v76 = vpop.f32.mrf.mxu0
    %v77 = vadd.f32 %v47, %v76
    %78 = vdwg.mxu0
    %v79 = vld [vmem:[%s1] sm:$0xff]
    %v80 = vld [vmem:[%s1 + $0x8] sm:$0xff]
    %v81 = vadd.f32 %v74, %v79
    %v82 = vadd.f32 %v77, %v80
    %v83 = vld [vmem:[%s4] sm:$0x1]
    %v84 = vld [vmem:[%s5] sm:$0x1]
    %v85 = vsel %vm49, %v81, 0.0
    %86 = vadd.xlane.f32.xlu0 %v85
    %v87 = vpop.xlane.xlu0 %86
    %v88 = vsel %vm49, %v82, 0.0
    %89 = vadd.xlane.f32.xlu0 %v88
    %v90 = vpop.xlane.xlu0 %89
    %v91 = vrcp.pop 32.0
    %v92 = vmul.f32 32.0, %v91
    %v93 = vsub.f32 1.0, %v92
    %v94 = vmul.f32 %v91, %v93
    %v95 = vadd.f32 %v91, %v94
    %vm96 = vweird.f32 %v91
    %v97 = vsel %vm96, %v91, %v95
    %v98 = vmul.f32 %v87, %v97
    %v99 = vmul.f32 %v90, %v97
    %v100 = vsub.f32 %v81, %v98
    %v101 = vsub.f32 %v82, %v99
    %v102 = vmul.f32 %v100, %v100
    %v103 = vmul.f32 %v101, %v101
    %v104 = vsel %vm49, %v102, 0.0
    %105 = vadd.xlane.f32.xlu0 %v104
    %v106 = vpop.xlane.xlu0 %105
    %v107 = vsel %vm49, %v103, 0.0
    %108 = vadd.xlane.f32.xlu0 %v107
    %v109 = vpop.xlane.xlu0 %108
    %v110 = vmul.f32 %v106, %v97
    %v111 = vmul.f32 %v109, %v97
    %v112 = vadd.f32 %v110, 1e-05
    %v113 = vadd.f32 %v111, 1e-05
    %v114 = vrsqrt.pop %v112
    %v115 = vmul.f32 %v114, %v112
    %v116 = vmul.f32 %v115, %v114
    %v117 = vmul.f32 0.5, %v116
    %v118 = vsub.f32 1.5, %v117
    %v119 = vmul.f32 %v114, %v118
    %vm120 = vweird.f32 %v112
    %vm121 = vweird.f32 %v114
    %vm122 = vmor %vm120, %vm121
    %v123 = vsel %vm122, %v114, %v119
    %v124 = vrsqrt.pop %v113
    %v125 = vmul.f32 %v124, %v113
    %v126 = vmul.f32 %v125, %v124
    %v127 = vmul.f32 0.5, %v126
    %v128 = vsub.f32 1.5, %v127
    %v129 = vmul.f32 %v124, %v128
    %vm130 = vweird.f32 %v113
    %vm131 = vweird.f32 %v124
    %vm132 = vmor %vm130, %vm131
    %v133 = vsel %vm132, %v124, %v129
    %v134 = vmul.f32 %v100, %v123
    %v135 = vmul.f32 %v101, %v133
    %v137 = vperm.slane %v83, 0
    %v139 = vmul.f32 %v134, %v137
    %v140 = vmul.f32 %v135, %v137
    %v142 = vperm.slane %v84, 0
    %v144 = vadd.f32 %v139, %v142
    %v145 = vadd.f32 %v140, %v142
    %146 = vst.msk [vmem:[%s6] sm:$0xff] %vm49, %v144
    %147 = vst.msk [vmem:[%s6 + $0x8] sm:$0xff] %vm49, %v145
    // Predicated region
    $region30: #{decoder_layer_forward.10} parent=1 // pred_check
      _
    $region31: #{decoder_layer_forward.10} parent=1 // pred_check_branch
      %149 = sbr.rel (0) target = $region33
    $region32: #{decoder_layer_forward.10} parent=1 // pred_region
      _
    $region33: #{decoder_layer_forward.10} parent=1 // pred_fallthru
      _
    // Predicated region
    $region34: #{decoder_layer_forward.10} parent=1 // pred_check
      _
    $region35: #{decoder_layer_forward.10} parent=1 // pred_check_branch
      %151 = sbr.rel (0) target = $region37
    $region36: #{decoder_layer_forward.10} parent=1 // pred_region
      _
    $region37: #{decoder_layer_forward.10} parent=1 // pred_fallthru
      _
    %152 = vsyncpa [#allocation3], 1

// kernel: decoder_layer_forward.8
$region0: #{decoder_layer_forward.8}
  #allocation0 [shape = 'u32[]', space=smem, size = 0x4, offset = 0x4, fixed_abs, tag = 'smem constant byte address 0x4 - core index']
  #allocation1 [shape = 'u32[72,128]{1,0:T(1,128)}', space=vmem, size = 0x9000, scoped, tag = 'internal scratch']
  %s0 = inlined_call_operand.vmem [shape: f32[16,32], index: 0, kind: input, shape index: {}]
  %s1 = inlined_call_operand.vmem [shape: f32[32,32], index: 1, kind: input, shape index: {}]
  %s2 = inlined_call_operand.vmem [shape: f32[1,32], index: 2, kind: input, shape index: {}]
  %s3 = inlined_call_operand.vmem [shape: f32[32,32], index: 3, kind: input, shape index: {}]
  %s4 = inlined_call_operand.vmem [shape: f32[1,32], index: 4, kind: input, shape index: {}]
  %s5 = inlined_call_operand.hbm [shape: f32[32,32], index: 5, kind: input, shape index: {}]
  %s6 = inlined_call_operand.vmem [shape: f32[1,32], index: 6, kind: input, shape index: {}]
  %s7 = inlined_call_operand.vmem [shape: f32[16,32], index: 7, kind: output, shape index: {0}]
  %s8 = inlined_call_operand.vmem [shape: f32[16,32], index: 8, kind: output, shape index: {1}]
  %s9 = inlined_call_operand.vmem [shape: f32[16,32], index: 9, kind: output, shape index: {2}]
  %10 = xla_tuple %s7, %s8, %s9
  %s11 = sld [smem:[#allocation0]]
  $region58: #{decoder_layer_forward.8} parent=0
    _
  %s13 = ssub.s32 1, %s11
  %s14 = scalar_select 0, %s13, %s11
  $region1: #{decoder_layer_forward.8} parent=0
    #allocation2 [shape = 'u8[16384]{0}', space=vmem, size = 0x4000, scoped, tag = 'input window, operand 5, single buffered']
    #allocation3 [shape = 's32[1]{0}', space=sflag, size = 0x4, scoped, tag = 'scoped memory for decoder_layer_forward.8']
    %15 = vsyncpa [#allocation3], 0
    // Predicated region
    $region2: #{decoder_layer_forward.8} parent=1 // pred_check
      _
    $region3: #{decoder_layer_forward.8} parent=1 // pred_check_branch
      %17 = sbr.rel (0) target = $region5
    $region4: #{decoder_layer_forward.8} parent=1 // pred_region
      _
    $region5: #{decoder_layer_forward.8} parent=1 // pred_fallthru
      _
    // Predicated region
    $region6: #{decoder_layer_forward.8} parent=1 // pred_check
      _
    $region7: #{decoder_layer_forward.8} parent=1 // pred_check_branch
      %19 = sbr.rel (0) target = $region9
    $region8: #{decoder_layer_forward.8} parent=1 // pred_region
      _
    $region9: #{decoder_layer_forward.8} parent=1 // pred_fallthru
      _
    // Predicated region
    $region10: #{decoder_layer_forward.8} parent=1 // pred_check
      _
    $region11: #{decoder_layer_forward.8} parent=1 // pred_check_branch
      %21 = sbr.rel (0) target = $region13
    $region12: #{decoder_layer_forward.8} parent=1 // pred_region
      _
    $region13: #{decoder_layer_forward.8} parent=1 // pred_fallthru
      _
    // Predicated region
    $region14: #{decoder_layer_forward.8} parent=1 // pred_check
      _
    $region15: #{decoder_layer_forward.8} parent=1 // pred_check_branch
      %23 = sbr.rel (0) target = $region17
    $region16: #{decoder_layer_forward.8} parent=1 // pred_region
      _
    $region17: #{decoder_layer_forward.8} parent=1 // pred_fallthru
      _
    // Predicated region
    $region18: #{decoder_layer_forward.8} parent=1 // pred_check
      _
    $region19: #{decoder_layer_forward.8} parent=1 // pred_check_branch
      %25 = sbr.rel (0) target = $region21
    $region20: #{decoder_layer_forward.8} parent=1 // pred_region
      _
    $region21: #{decoder_layer_forward.8} parent=1 // pred_fallthru
      _
    // Predicated region
    $region22: #{decoder_layer_forward.8} parent=1 // pred_check
      _
    $region23: #{decoder_layer_forward.8} parent=1 // pred_check_branch
      %27 = sbr.rel (0) target = $region25
    $region24: #{decoder_layer_forward.8} parent=1 // pred_region
      %29 = vsyncadd [#allocation3], 0
      %s30 = sshll.u32 %s5, 4
      %s31 = int_to_ptr.hbm [resolvable:$true] %s30
      %s32 = sshll.u32 [#allocation2], 4
      %s33 = int_to_ptr.vmem [resolvable:$true] %s32
      %38 = dma.hbm_to_vmem [thread:$0]  %s31, 512, %s33, [#allocation3], 128, 128, 8
    $region25: #{decoder_layer_forward.8} parent=1 // pred_fallthru
      _
    // Predicated region
    $region26: #{decoder_layer_forward.8} parent=1 // pred_check
      _
    $region27: #{decoder_layer_forward.8} parent=1 // pred_check_branch
      %40 = sbr.rel (0) target = $region29
    $region28: #{decoder_layer_forward.8} parent=1 // pred_region
      _
    $region29: #{decoder_layer_forward.8} parent=1 // pred_fallthru
      _
    // Predicated region
    $region30: #{decoder_layer_forward.8} parent=1 // pred_check
      _
    $region31: #{decoder_layer_forward.8} parent=1 // pred_check_branch
      %42 = sbr.rel (0) target = $region33
    $region32: #{decoder_layer_forward.8} parent=1 // pred_region
      %44 = dma.done [#allocation3], 512
    $region33: #{decoder_layer_forward.8} parent=1 // pred_fallthru
      _
    %v45 = vld [vmem:[%s0] sm:$0xff]
    %v46 = vld [vmem:[%s0 + $0x8] sm:$0xff]
    %v47 = vld [vmem:[%s1] sm:$0xff]
    %v48 = vld [vmem:[%s1 + $0x8] sm:$0xff]
    %v49 = vld [vmem:[%s1 + $0x10] sm:$0xff]
    %v50 = vld [vmem:[%s1 + $0x18] sm:$0xff]
    %v51 = vld [vmem:[%s2] sm:$0x1]
    %v53 = vperm.slane %v51, 0
    %vm55 = vcmask 261120
    %v57 = vsel %vm55, %v45, 0
    %v60 = vsel %vm55, %v46, 0
    %62 = vmatpush.msra.mxu0 0.0
    %63 = vmatpush.msra.mxu0 0.0
    %64 = vmatpush.msra.mxu0 0.0
    %65 = vmatpush.msra.mxu0 0.0
    %66 = vmatpush.msra.mxu0 0.0
    %67 = vmatpush.msra.mxu0 0.0
    %68 = vmatpush.msra.mxu0 0.0
    %69 = vmatpush.msra.mxu0 0.0
    %70 = vmatpush.msra.mxu0 0.0
    %71 = vmatpush.msra.mxu0 0.0
    %72 = vmatpush.msra.mxu0 0.0
    %73 = vmatpush.msra.mxu0 0.0
    %74 = vmatpush.msra.mxu0 %v50
    %75 = vmatpush.msra.mxu0 %v49
    %76 = vmatpush.msra.mxu0 %v48
    %77 = vmatpush.msra.mxu0 %v47
    %78 = vmatmul.f32.gmra.mxu0 %v57
    %v79 = vpop.f32.mrf.mxu0
    %v80 = vadd.f32 %v53, %v79
    %81 = vmatmul.f32.gmra.mxu0 %v60
    %v82 = vpop.f32.mrf.mxu0
    %v83 = vadd.f32 %v53, %v82
    %84 = vdwg.mxu0
    %85 = vst.msk [vmem:[%s7] sm:$0xff] %vm55, %v80
    %86 = vst.msk [vmem:[%s7 + $0x8] sm:$0xff] %vm55, %v83
    %v87 = vld [vmem:[%s3] sm:$0xff]
    %v88 = vld [vmem:[%s3 + $0x8] sm:$0xff]
    %v89 = vld [vmem:[%s3 + $0x10] sm:$0xff]
    %v90 = vld [vmem:[%s3 + $0x18] sm:$0xff]
    %v91 = vld [vmem:[%s4] sm:$0x1]
    %v93 = vperm.slane %v91, 0
    %95 = vmatpush.msra.mxu0 0.0
    %96 = vmatpush.msra.mxu0 0.0
    %97 = vmatpush.msra.mxu0 0.0
    %98 = vmatpush.msra.mxu0 0.0
    %99 = vmatpush.msra.mxu0 0.0
    %100 = vmatpush.msra.mxu0 0.0
    %101 = vmatpush.msra.mxu0 0.0
    %102 = vmatpush.msra.mxu0 0.0
    %103 = vmatpush.msra.mxu0 0.0
    %104 = vmatpush.msra.mxu0 0.0
    %105 = vmatpush.msra.mxu0 0.0
    %106 = vmatpush.msra.mxu0 0.0
    %107 = vmatpush.msra.mxu0 %v90
    %108 = vmatpush.msra.mxu0 %v89
    %109 = vmatpush.msra.mxu0 %v88
    %110 = vmatpush.msra.mxu0 %v87
    %111 = vmatmul.f32.gmra.mxu0 %v57
    %v112 = vpop.f32.mrf.mxu0
    %v113 = vadd.f32 %v93, %v112
    %114 = vmatmul.f32.gmra.mxu0 %v60
    %v115 = vpop.f32.mrf.mxu0
    %v116 = vadd.f32 %v93, %v115
    %117 = vdwg.mxu0
    %118 = vst.msk [vmem:[%s8] sm:$0xff] %vm55, %v113
    %119 = vst.msk [vmem:[%s8 + $0x8] sm:$0xff] %vm55, %v116
    %v120 = vld [vmem:[#allocation2] sm:$0xff]
    %v121 = vld [vmem:[#allocation2 + $0x8] sm:$0xff]
    %v122 = vld [vmem:[#allocation2 + $0x10] sm:$0xff]
    %v123 = vld [vmem:[#allocation2 + $0x18] sm:$0xff]
    %v124 = vld [vmem:[%s6] sm:$0x1]
    %v126 = vperm.slane %v124, 0
    %128 = vmatpush.msra.mxu0 0.0
    %129 = vmatpush.msra.mxu0 0.0
    %130 = vmatpush.msra.mxu0 0.0
    %131 = vmatpush.msra.mxu0 0.0
    %132 = vmatpush.msra.mxu0 0.0
    %133 = vmatpush.msra.mxu0 0.0
    %134 = vmatpush.msra.mxu0 0.0
    %135 = vmatpush.msra.mxu0 0.0
    %136 = vmatpush.msra.mxu0 0.0
    %137 = vmatpush.msra.mxu0 0.0
    %138 = vmatpush.msra.mxu0 0.0
    %139 = vmatpush.msra.mxu0 0.0
    %140 = vmatpush.msra.mxu0 %v123
    %141 = vmatpush.msra.mxu0 %v122
    %142 = vmatpush.msra.mxu0 %v121
    %143 = vmatpush.msra.mxu0 %v120
    %144 = vmatmul.f32.gmra.mxu0 %v57
    %v145 = vpop.f32.mrf.mxu0
    %v146 = vadd.f32 %v126, %v145
    %147 = vmatmul.f32.gmra.mxu0 %v60
    %v148 = vpop.f32.mrf.mxu0
    %v149 = vadd.f32 %v126, %v148
    %150 = vdwg.mxu0
    %151 = vst.msk [vmem:[%s9] sm:$0xff] %vm55, %v146
    %152 = vst.msk [vmem:[%s9 + $0x8] sm:$0xff] %vm55, %v149
    // Predicated region
    $region34: #{decoder_layer_forward.8} parent=1 // pred_check
      _
    $region35: #{decoder_layer_forward.8} parent=1 // pred_check_branch
      %154 = sbr.rel (0) target = $region37
    $region36: #{decoder_layer_forward.8} parent=1 // pred_region
      _
    $region37: #{decoder_layer_forward.8} parent=1 // pred_fallthru
      _
    // Predicated region
    $region38: #{decoder_layer_forward.8} parent=1 // pred_check
      _
    $region39: #{decoder_layer_forward.8} parent=1 // pred_check_branch
      %156 = sbr.rel (0) target = $region41
    $region40: #{decoder_layer_forward.8} parent=1 // pred_region
      _
    $region41: #{decoder_layer_forward.8} parent=1 // pred_fallthru
      _
    // Predicated region
    $region42: #{decoder_layer_forward.8} parent=1 // pred_check
      _
    $region43: #{decoder_layer_forward.8} parent=1 // pred_check_branch
      %158 = sbr.rel (0) target = $region45
    $region44: #{decoder_layer_forward.8} parent=1 // pred_region
      _
    $region45: #{decoder_layer_forward.8} parent=1 // pred_fallthru
      _
    // Predicated region
    $region46: #{decoder_layer_forward.8} parent=1 // pred_check
      _
    $region47: #{decoder_layer_forward.8} parent=1 // pred_check_branch
      %160 = sbr.rel (0) target = $region49
    $region48: #{decoder_layer_forward.8} parent=1 // pred_region
      _
    $region49: #{decoder_layer_forward.8} parent=1 // pred_fallthru
      _
    // Predicated region
    $region50: #{decoder_layer_forward.8} parent=1 // pred_check
      _
    $region51: #{decoder_layer_forward.8} parent=1 // pred_check_branch
      %162 = sbr.rel (0) target = $region53
    $region52: #{decoder_layer_forward.8} parent=1 // pred_region
      _
    $region53: #{decoder_layer_forward.8} parent=1 // pred_fallthru
      _
    // Predicated region
    $region54: #{decoder_layer_forward.8} parent=1 // pred_check
      _
    $region55: #{decoder_layer_forward.8} parent=1 // pred_check_branch
      %164 = sbr.rel (0) target = $region57
    $region56: #{decoder_layer_forward.8} parent=1 // pred_region
      _
    $region57: #{decoder_layer_forward.8} parent=1 // pred_fallthru
      _
    %165 = vsyncpa [#allocation3], 1

// kernel: decoder_layer_forward.9
$region0: #{decoder_layer_forward.9}
  #allocation0 [shape = 'u32[]', space=smem, size = 0x4, offset = 0x4, fixed_abs, tag = 'smem constant byte address 0x4 - core index']
  #allocation1 [shape = 'u32[72,128]{1,0:T(1,128)}', space=vmem, size = 0x9000, scoped, tag = 'internal scratch']
  %s0 = inlined_call_operand.vmem [shape: f32[2,8,32], index: 0, kind: input, shape index: {}]
  %s1 = inlined_call_operand.vmem [shape: f32[2,8,32], index: 1, kind: input, shape index: {}]
  %s2 = inlined_call_operand.vmem [shape: f32[2,8,32], index: 2, kind: input, shape index: {}]
  %s3 = inlined_call_operand.vmem [shape: f32[2,1,8], index: 3, kind: input, shape index: {}]
  %s4 = inlined_call_operand.vmem [shape: f32[2,8,32], index: 4, kind: output, shape index: {}]
  %s5 = sld [smem:[#allocation0]]
  $region49: #{decoder_layer_forward.9} parent=0
    _
  %s7 = ssub.s32 1, %s5
  %s8 = scalar_select 0, %s7, %s5
  loop: start=0, step=1, limit=4
  $region2: #{decoder_layer_forward.9} parent=0 // loop_pre_header
    _
  $region3: #{decoder_layer_forward.9} parent=0 // loop_header
    %s10 = sphi 0, %s14
    %p11 = scmp.ge.s32.totalorder %s10, 4
    %s20 = sphi 0, %s22
    %s23 = sphi 0, %s20
    %s24 = sphi 0, %s23
    %s40 = sphi 0, %s24
    %s46 = sphi 0, %s48
    %s49 = sphi 0, %s46
    %s50 = sphi 0, %s49
    %s66 = sphi 0, %s50
    %s72 = sphi 0, %s74
    %s75 = sphi 0, %s72
    %s76 = sphi 0, %s75
    %s92 = sphi 0, %s76
    %s98 = sphi 0, %s100
    %s101 = sphi 0, %s98
    %s102 = sphi 0, %s101
    %s118 = sphi 0, %s102
    %s124 = sphi 0, %s126
    %s127 = sphi 0, %s124
    %s128 = sphi 0, %s127
    %s144 = sphi 0, %s128
  $region4: #{decoder_layer_forward.9} parent=0 // loop_header_branch
    %13 = sbr.rel (%p11) target = $region8
  $region5: #{decoder_layer_forward.9} parent=0 // loop_body
    %s15 = ssub.s32 %s10, 1
    %s16 = ssub.s32 %s10, 2
    %s17 = sadd.s32 %s10, 1
    %s18 = ssub.s32 %s10, %s17
    %p19 = scmp.eq.s32.totalorder %s18, 0
    %s21 = sadd.s32 %s20, 1
    %s22 = scalar_select %p19, %s20, %s21
    %p25 = pneg %p19
    %p26 = scmp.eq.s32.totalorder %s10, 1
    %p27 = por %p25, %p26
    %p28 = scmp.ne.s32.totalorder %s20, %s23
    %p29 = scmp.eq.s32.totalorder %s10, 0
    %p30 = por %p28, %p29
    %p31 = scmp.ne.s32.totalorder %s20, %s23
    %p32 = scmp.eq.s32.totalorder %s15, 1
    %p33 = por %p31, %p32
    %p34 = scmp.ne.s32.totalorder %s23, %s24
    %p35 = scmp.eq.s32.totalorder %s15, 0
    %p36 = por %p34, %p35
    %p37 = scmp.ne.s32.totalorder %s23, %s24
    %p38 = scmp.eq.s32.totalorder %s16, 1
    %p39 = por %p37, %p38
    %p41 = scmp.ne.s32.totalorder %s24, %s40
    %p42 = scmp.eq.s32.totalorder %s16, 0
    %p43 = por %p41, %p42
    %s44 = ssub.s32 %s10, %s17
    %p45 = scmp.eq.s32.totalorder %s44, 0
    %s47 = sadd.s32 %s46, 1
    %s48 = scalar_select %p45, %s46, %s47
    %p51 = pneg %p45
    %p52 = scmp.eq.s32.totalorder %s10, 1
    %p53 = por %p51, %p52
    %p54 = scmp.ne.s32.totalorder %s46, %s49
    %p55 = scmp.eq.s32.totalorder %s10, 0
    %p56 = por %p54, %p55
    %p57 = scmp.ne.s32.totalorder %s46, %s49
    %p58 = scmp.eq.s32.totalorder %s15, 1
    %p59 = por %p57, %p58
    %p60 = scmp.ne.s32.totalorder %s49, %s50
    %p61 = scmp.eq.s32.totalorder %s15, 0
    %p62 = por %p60, %p61
    %p63 = scmp.ne.s32.totalorder %s49, %s50
    %p64 = scmp.eq.s32.totalorder %s16, 1
    %p65 = por %p63, %p64
    %p67 = scmp.ne.s32.totalorder %s50, %s66
    %p68 = scmp.eq.s32.totalorder %s16, 0
    %p69 = por %p67, %p68
    %s70 = ssub.s32 %s10, %s17
    %p71 = scmp.eq.s32.totalorder %s70, 0
    %s73 = sadd.s32 %s72, 1
    %s74 = scalar_select %p71, %s72, %s73
    %p77 = pneg %p71
    %p78 = scmp.eq.s32.totalorder %s10, 1
    %p79 = por %p77, %p78
    %p80 = scmp.ne.s32.totalorder %s72, %s75
    %p81 = scmp.eq.s32.totalorder %s10, 0
    %p82 = por %p80, %p81
    %p83 = scmp.ne.s32.totalorder %s72, %s75
    %p84 = scmp.eq.s32.totalorder %s15, 1
    %p85 = por %p83, %p84
    %p86 = scmp.ne.s32.totalorder %s75, %s76
    %p87 = scmp.eq.s32.totalorder %s15, 0
    %p88 = por %p86, %p87
    %p89 = scmp.ne.s32.totalorder %s75, %s76
    %p90 = scmp.eq.s32.totalorder %s16, 1
    %p91 = por %p89, %p90
    %p93 = scmp.ne.s32.totalorder %s76, %s92
    %p94 = scmp.eq.s32.totalorder %s16, 0
    %p95 = por %p93, %p94
    %s96 = ssub.s32 %s10, %s17
    %p97 = scmp.eq.s32.totalorder %s96, 0
    %s99 = sadd.s32 %s98, 1
    %s100 = scalar_select %p97, %s98, %s99
    %p103 = pneg %p97
    %p104 = scmp.eq.s32.totalorder %s10, 1
    %p105 = por %p103, %p104
    %p106 = scmp.ne.s32.totalorder %s98, %s101
    %p107 = scmp.eq.s32.totalorder %s10, 0
    %p108 = por %p106, %p107
    %p109 = scmp.ne.s32.totalorder %s98, %s101
    %p110 = scmp.eq.s32.totalorder %s15, 1
    %p111 = por %p109, %p110
    %p112 = scmp.ne.s32.totalorder %s101, %s102
    %p113 = scmp.eq.s32.totalorder %s15, 0
    %p114 = por %p112, %p113
    %p115 = scmp.ne.s32.totalorder %s101, %s102
    %p116 = scmp.eq.s32.totalorder %s16, 1
    %p117 = por %p115, %p116
    %p119 = scmp.ne.s32.totalorder %s102, %s118
    %p120 = scmp.eq.s32.totalorder %s16, 0
    %p121 = por %p119, %p120
    %s122 = ssub.s32 %s10, %s17
    %p123 = scmp.eq.s32.totalorder %s122, 0
    %s125 = sadd.s32 %s124, 1
    %s126 = scalar_select %p123, %s124, %s125
    %p129 = pneg %p123
    %p130 = scmp.eq.s32.totalorder %s10, 1
    %p131 = por %p129, %p130
    %p132 = scmp.ne.s32.totalorder %s124, %s127
    %p133 = scmp.eq.s32.totalorder %s10, 0
    %p134 = por %p132, %p133
    %p135 = scmp.ne.s32.totalorder %s124, %s127
    %p136 = scmp.eq.s32.totalorder %s15, 1
    %p137 = por %p135, %p136
    %p138 = scmp.ne.s32.totalorder %s127, %s128
    %p139 = scmp.eq.s32.totalorder %s15, 0
    %p140 = por %p138, %p139
    %p141 = scmp.ne.s32.totalorder %s127, %s128
    %p142 = scmp.eq.s32.totalorder %s16, 1
    %p143 = por %p141, %p142
    %p145 = scmp.ne.s32.totalorder %s128, %s144
    %p146 = scmp.eq.s32.totalorder %s16, 0
    %p147 = por %p145, %p146
    %p148 = scmp.le.s32.totalorder 1, %s10
    %p149 = scmp.lt.s32.totalorder %s10, 3
    %p150 = pnand %p148, %p149
    %p151 = pneg %p150
    // Predicated region
    $region9: #{decoder_layer_forward.9} parent=5 // pred_check
      _
    $region10: #{decoder_layer_forward.9} parent=5 // pred_check_branch
      %153 = sbr.rel (%p150) target = $region12
    $region11: #{decoder_layer_forward.9} parent=5 // pred_region
      %s154 = ssub.s32 %s10, 1
    $region12: #{decoder_layer_forward.9} parent=5 // pred_fallthru
      _
    %p155 = scmp.lt.s32.totalorder %s10, 2
    // Predicated region
    $region13: #{decoder_layer_forward.9} parent=5 // pred_check
      %p156 = pneg %p155
    $region14: #{decoder_layer_forward.9} parent=5 // pred_check_branch
      %158 = sbr.rel (%p156) target = $region16
    $region15: #{decoder_layer_forward.9} parent=5 // pred_region
      // Predicated region
      $region17: #{decoder_layer_forward.9} parent=15 // pred_check
        %p159 = pneg %p30
      $region18: #{decoder_layer_forward.9} parent=15 // pred_check_branch
        %161 = sbr.rel (%p159) target = $region20
      $region19: #{decoder_layer_forward.9} parent=15 // pred_region
        %p162 = scmp.lt.s32.totalorder %s10, 1
        %s163 = scalar_select %p162, %s10, 1
        %s164 = smul.addr %s163, 8
        %s165 = scalar_lea.vmem %s0, %s164
      $region20: #{decoder_layer_forward.9} parent=15 // pred_fallthru
        _
      // Predicated region
      $region21: #{decoder_layer_forward.9} parent=15 // pred_check
        %p166 = pneg %p56
      $region22: #{decoder_layer_forward.9} parent=15 // pred_check_branch
        %168 = sbr.rel (%p166) target = $region24
      $region23: #{decoder_layer_forward.9} parent=15 // pred_region
        %p169 = scmp.lt.s32.totalorder %s10, 1
        %s170 = scalar_select %p169, %s10, 1
        %s171 = smul.addr %s170, 8
        %s172 = scalar_lea.vmem %s1, %s171
      $region24: #{decoder_layer_forward.9} parent=15 // pred_fallthru
        _
      // Predicated region
      $region25: #{decoder_layer_forward.9} parent=15 // pred_check
        %p173 = pneg %p82
      $region26: #{decoder_layer_forward.9} parent=15 // pred_check_branch
        %175 = sbr.rel (%p173) target = $region28
      $region27: #{decoder_layer_forward.9} parent=15 // pred_region
        %p176 = scmp.lt.s32.totalorder %s10, 1
        %s177 = scalar_select %p176, %s10, 1
        %s178 = smul.addr %s177, 8
        %s179 = scalar_lea.vmem %s2, %s178
      $region28: #{decoder_layer_forward.9} parent=15 // pred_fallthru
        _
      // Predicated region
      $region29: #{decoder_layer_forward.9} parent=15 // pred_check
        %p180 = pneg %p108
      $region30: #{decoder_layer_forward.9} parent=15 // pred_check_branch
        %182 = sbr.rel (%p180) target = $region32
      $region31: #{decoder_layer_forward.9} parent=15 // pred_region
        %p183 = scmp.lt.s32.totalorder %s10, 1
        %s184 = scalar_select %p183, %s10, 1
        %s185 = scalar_lea.vmem %s3, %s184
      $region32: #{decoder_layer_forward.9} parent=15 // pred_fallthru
        _
    $region16: #{decoder_layer_forward.9} parent=5 // pred_fallthru
      _
    %p186 = scmp.le.s32.totalorder 1, %s10
    %p187 = scmp.lt.s32.totalorder %s10, 3
    %p188 = pnand %p186, %p187
    %p189 = pneg %p188
    // Predicated region
    $region33: #{decoder_layer_forward.9} parent=5 // pred_check
      _
    $region34: #{decoder_layer_forward.9} parent=5 // pred_check_branch
      %191 = sbr.rel (%p188) target = $region36
    $region35: #{decoder_layer_forward.9} parent=5 // pred_region
      %s192 = ssub.s32 %s10, 1
      %p193 = scmp.lt.s32.totalorder %s15, 1
      %s194 = scalar_select %p193, %s15, 1
      %s195 = smul.addr %s194, 8
      %s196 = scalar_lea.vmem %s0, %s195
      %p197 = pneg %p36
      %p198 = pneg %p33
      %p199 = scmp.lt.s32.totalorder %s15, 1
      %s200 = scalar_select %p199, %s15, 1
      %s201 = smul.addr %s200, 8
      %s202 = scalar_lea.vmem %s1, %s201
      %p203 = pneg %p62
      %p204 = pneg %p59
      %p205 = scmp.lt.s32.totalorder %s15, 1
      %s206 = scalar_select %p205, %s15, 1
      %s207 = smul.addr %s206, 8
      %s208 = scalar_lea.vmem %s2, %s207
      %p209 = pneg %p88
      %p210 = pneg %p85
      %p211 = scmp.lt.s32.totalorder %s15, 1
      %s212 = scalar_select %p211, %s15, 1
      %s213 = scalar_lea.vmem %s3, %s212
      %p214 = pneg %p114
      %p215 = pneg %p111
      %p216 = pneg %p140
      %p217 = pneg %p137
      %p218 = scmp.lt.s32.totalorder %s15, 1
      %s219 = scalar_select %p218, %s15, 1
      %s220 = smul.addr %s219, 8
      %s221 = scalar_lea.vmem %s4, %s220
      %p222 = scmp.lt.s32.totalorder %s15, 1
      %s223 = scalar_select %p222, %s15, 1
      %s224 = smul.addr %s223, 8
      %s225 = scalar_lea.vmem %s0, %s224
      %p226 = scmp.lt.s32.totalorder %s15, 1
      %s227 = scalar_select %p226, %s15, 1
      %s228 = smul.addr %s227, 8
      %s229 = scalar_lea.vmem %s1, %s228
      %p230 = scmp.lt.s32.totalorder %s15, 1
      %s231 = scalar_select %p230, %s15, 1
      %s232 = smul.addr %s231, 8
      %s233 = scalar_lea.vmem %s2, %s232
      %p234 = scmp.lt.s32.totalorder %s15, 1
      %s235 = scalar_select %p234, %s15, 1
      %s236 = scalar_lea.vmem %s3, %s235
      %p237 = scmp.lt.s32.totalorder %s15, 1
      %s238 = scalar_select %p237, %s15, 1
      %s239 = smul.addr %s238, 8
      %s240 = scalar_lea.vmem %s4, %s239
      %v241 = vld [vmem:[%s225] sm:$0xff]
      %v242 = vld [vmem:[%s229] sm:$0xff]
      %v243 = vld [vmem:[%s233] sm:$0xff]
      %v244 = vld [vmem:[%s236] sm:$0x1]
      %v246 = vperm.slane %v244, 0
      %vm248 = vcmask 64512
      %v250 = vsel %vm248, %v241, 0
      %v253 = vsel %vm248, %v242, 0
      %255 = vmatpush.xpose.msra.mxu0 0.0
      %256 = vmatpush.xpose.msra.mxu0 0.0
      %257 = vmatpush.xpose.msra.mxu0 0.0
      %258 = vmatpush.xpose.msra.mxu0 0.0
      %259 = vmatpush.xpose.msra.mxu0 0.0
      %260 = vmatpush.xpose.msra.mxu0 0.0
      %261 = vmatpush.xpose.msra.mxu0 0.0
      %262 = vmatpush.xpose.msra.mxu0 0.0
      %263 = vmatpush.xpose.msra.mxu0 0.0
      %264 = vmatpush.xpose.msra.mxu0 0.0
      %265 = vmatpush.xpose.msra.mxu0 0.0
      %266 = vmatpush.xpose.msra.mxu0 0.0
      %267 = vmatpush.xpose.msra.mxu0 0.0
      %268 = vmatpush.xpose.msra.mxu0 0.0
      %269 = vmatpush.xpose.msra.mxu0 0.0
      %270 = vmatpush.xpose.msra.mxu0 %v253
      %271 = vmatmul.f32.gmra.mxu0 %v250
      %v272 = vpop.f32.mrf.mxu0
      %v273 = vadd.f32 %v246, %v272
      %274 = vdwg.mxu0
      %v275 = vsel %vm248, %v273, -inf
      %276 = vmax.xlane.f32.xlu0 %v275
      %v277 = vpop.xlane.xlu0 %276
      %v278 = vsub.f32 %v273, %v277
      %v279 = vmul.f32 %v278, 1.442695
      %v280 = vpow.pop %v279
      %v281 = vsel %vm248, %v280, 0.0
      %282 = vadd.xlane.f32.xlu0 %v281
      %v283 = vpop.xlane.xlu0 %282
      %v284 = vrcp.pop %v283
      %v285 = vmul.f32 %v280, %v284
      %v287 = vsel %vm248, %v285, 0
      %289 = vmatpush.msra.mxu0 0.0
      %290 = vmatpush.msra.mxu0 0.0
      %291 = vmatpush.msra.mxu0 0.0
      %292 = vmatpush.msra.mxu0 0.0
      %293 = vmatpush.msra.mxu0 0.0
      %294 = vmatpush.msra.mxu0 0.0
      %295 = vmatpush.msra.mxu0 0.0
      %296 = vmatpush.msra.mxu0 0.0
      %297 = vmatpush.msra.mxu0 0.0
      %298 = vmatpush.msra.mxu0 0.0
      %299 = vmatpush.msra.mxu0 0.0
      %300 = vmatpush.msra.mxu0 0.0
      %301 = vmatpush.msra.mxu0 0.0
      %302 = vmatpush.msra.mxu0 0.0
      %303 = vmatpush.msra.mxu0 0.0
      %304 = vmatpush.msra.mxu0 %v243
      %305 = vmatmul.f32.gmra.mxu0 %v287
      %v306 = vpop.f32.mrf.mxu0
      %v307 = vadd.f32 0.0, %v306
      %308 = vdwg.mxu0
      %309 = vrot.lane.b32.xlu0 %v241, 120
      %v310 = vpop.permute.xlu0 %309
      %311 = vrot.lane.b32.xlu0 %v242, 120
      %v312 = vpop.permute.xlu0 %311
      %v313 = vsel %vm248, %v310, 0
      %v315 = vsel %vm248, %v312, 0
      %317 = vmatpush.xpose.msra.mxu0 0.0
      %318 = vmatpush.xpose.msra.mxu0 0.0
      %319 = vmatpush.xpose.msra.mxu0 0.0
      %320 = vmatpush.xpose.msra.mxu0 0.0
      %321 = vmatpush.xpose.msra.mxu0 0.0
      %322 = vmatpush.xpose.msra.mxu0 0.0
      %323 = vmatpush.xpose.msra.mxu0 0.0
      %324 = vmatpush.xpose.msra.mxu0 0.0
      %325 = vmatpush.xpose.msra.mxu0 0.0
      %326 = vmatpush.xpose.msra.mxu0 0.0
      %327 = vmatpush.xpose.msra.mxu0 0.0
      %328 = vmatpush.xpose.msra.mxu0 0.0
      %329 = vmatpush.xpose.msra.mxu0 0.0
      %330 = vmatpush.xpose.msra.mxu0 0.0
      %331 = vmatpush.xpose.msra.mxu0 0.0
      %332 = vmatpush.xpose.msra.mxu0 %v315
      %333 = vmatmul.f32.gmra.mxu0 %v313
      %v334 = vpop.f32.mrf.mxu0
      %v335 = vadd.f32 %v246, %v334
      %336 = vdwg.mxu0
      %v337 = vsel %vm248, %v335, -inf
      %338 = vmax.xlane.f32.xlu0 %v337
      %v339 = vpop.xlane.xlu0 %338
      %v340 = vsub.f32 %v335, %v339
      %v341 = vmul.f32 %v340, 1.442695
      %v342 = vpow.pop %v341
      %v343 = vsel %vm248, %v342, 0.0
      %344 = vadd.xlane.f32.xlu0 %v343
      %v345 = vpop.xlane.xlu0 %344
      %v346 = vrcp.pop %v345
      %v347 = vmul.f32 %v342, %v346
      %349 = vrot.lane.b32.xlu0 %v243, 120
      %v350 = vpop.permute.xlu0 %349
      %v353 = vsel %vm248, %v347, 0
      %355 = vmatpush.msra.mxu0 0.0
      %356 = vmatpush.msra.mxu0 0.0
      %357 = vmatpush.msra.mxu0 0.0
      %358 = vmatpush.msra.mxu0 0.0
      %359 = vmatpush.msra.mxu0 0.0
      %360 = vmatpush.msra.mxu0 0.0
      %361 = vmatpush.msra.mxu0 0.0
      %362 = vmatpush.msra.mxu0 0.0
      %363 = vmatpush.msra.mxu0 0.0
      %364 = vmatpush.msra.mxu0 0.0
      %365 = vmatpush.msra.mxu0 0.0
      %366 = vmatpush.msra.mxu0 0.0
      %367 = vmatpush.msra.mxu0 0.0
      %368 = vmatpush.msra.mxu0 0.0
      %369 = vmatpush.msra.mxu0 0.0
      %370 = vmatpush.msra.mxu0 %v350
      %371 = vmatmul.f32.gmra.mxu0 %v353
      %v372 = vpop.f32.mrf.mxu0
      %v373 = vadd.f32 0.0, %v372
      %374 = vdwg.mxu0
      %375 = vrot.lane.b32.xlu0 %v241, 112
      %v376 = vpop.permute.xlu0 %375
      %377 = vrot.lane.b32.xlu0 %v242, 112
      %v378 = vpop.permute.xlu0 %377
      %v379 = vsel %vm248, %v376, 0
      %v381 = vsel %vm248, %v378, 0
      %383 = vmatpush.xpose.msra.mxu0 0.0
      %384 = vmatpush.xpose.msra.mxu0 0.0
      %385 = vmatpush.xpose.msra.mxu0 0.0
      %386 = vmatpush.xpose.msra.mxu0 0.0
      %387 = vmatpush.xpose.msra.mxu0 0.0
      %388 = vmatpush.xpose.msra.mxu0 0.0
      %389 = vmatpush.xpose.msra.mxu0 0.0
      %390 = vmatpush.xpose.msra.mxu0 0.0
      %391 = vmatpush.xpose.msra.mxu0 0.0
      %392 = vmatpush.xpose.msra.mxu0 0.0
      %393 = vmatpush.xpose.msra.mxu0 0.0
      %394 = vmatpush.xpose.msra.mxu0 0.0
      %395 = vmatpush.xpose.msra.mxu0 0.0
      %396 = vmatpush.xpose.msra.mxu0 0.0
      %397 = vmatpush.xpose.msra.mxu0 0.0
      %398 = vmatpush.xpose.msra.mxu0 %v381
      %399 = vmatmul.f32.gmra.mxu0 %v379
      %v400 = vpop.f32.mrf.mxu0
      %v401 = vadd.f32 %v246, %v400
      %402 = vdwg.mxu0
      %v403 = vsel %vm248, %v401, -inf
      %404 = vmax.xlane.f32.xlu0 %v403
      %v405 = vpop.xlane.xlu0 %404
      %v406 = vsub.f32 %v401, %v405
      %v407 = vmul.f32 %v406, 1.442695
      %v408 = vpow.pop %v407
      %v409 = vsel %vm248, %v408, 0.0
      %410 = vadd.xlane.f32.xlu0 %v409
      %v411 = vpop.xlane.xlu0 %410
      %v412 = vrcp.pop %v411
      %v413 = vmul.f32 %v408, %v412
      %414 = vrot.lane.b32.xlu0 %v243, 112
      %v415 = vpop.permute.xlu0 %414
      %v418 = vsel %vm248, %v413, 0
      %420 = vmatpush.msra.mxu0 0.0
      %421 = vmatpush.msra.mxu0 0.0
      %422 = vmatpush.msra.mxu0 0.0
      %423 = vmatpush.msra.mxu0 0.0
      %424 = vmatpush.msra.mxu0 0.0
      %425 = vmatpush.msra.mxu0 0.0
      %426 = vmatpush.msra.mxu0 0.0
      %427 = vmatpush.msra.mxu0 0.0
      %428 = vmatpush.msra.mxu0 0.0
      %429 = vmatpush.msra.mxu0 0.0
      %430 = vmatpush.msra.mxu0 0.0
      %431 = vmatpush.msra.mxu0 0.0
      %432 = vmatpush.msra.mxu0 0.0
      %433 = vmatpush.msra.mxu0 0.0
      %434 = vmatpush.msra.mxu0 0.0
      %435 = vmatpush.msra.mxu0 %v415
      %436 = vmatmul.f32.gmra.mxu0 %v418
      %v437 = vpop.f32.mrf.mxu0
      %v438 = vadd.f32 0.0, %v437
      %439 = vdwg.mxu0
      %440 = vrot.lane.b32.xlu0 %v241, 104
      %v441 = vpop.permute.xlu0 %440
      %442 = vrot.lane.b32.xlu0 %v242, 104
      %v443 = vpop.permute.xlu0 %442
      %v444 = vsel %vm248, %v441, 0
      %v446 = vsel %vm248, %v443, 0
      %448 = vmatpush.xpose.msra.mxu0 0.0
      %449 = vmatpush.xpose.msra.mxu0 0.0
      %450 = vmatpush.xpose.msra.mxu0 0.0
      %451 = vmatpush.xpose.msra.mxu0 0.0
      %452 = vmatpush.xpose.msra.mxu0 0.0
      %453 = vmatpush.xpose.msra.mxu0 0.0
      %454 = vmatpush.xpose.msra.mxu0 0.0
      %455 = vmatpush.xpose.msra.mxu0 0.0
      %456 = vmatpush.xpose.msra.mxu0 0.0
      %457 = vmatpush.xpose.msra.mxu0 0.0
      %458 = vmatpush.xpose.msra.mxu0 0.0
      %459 = vmatpush.xpose.msra.mxu0 0.0
      %460 = vmatpush.xpose.msra.mxu0 0.0
      %461 = vmatpush.xpose.msra.mxu0 0.0
      %462 = vmatpush.xpose.msra.mxu0 0.0
      %463 = vmatpush.xpose.msra.mxu0 %v446
      %464 = vmatmul.f32.gmra.mxu0 %v444
      %v465 = vpop.f32.mrf.mxu0
      %v466 = vadd.f32 %v246, %v465
      %467 = vdwg.mxu0
      %v468 = vsel %vm248, %v466, -inf
      %469 = vmax.xlane.f32.xlu0 %v468
      %v470 = vpop.xlane.xlu0 %469
      %v471 = vsub.f32 %v466, %v470
      %v472 = vmul.f32 %v471, 1.442695
      %v473 = vpow.pop %v472
      %v474 = vsel %vm248, %v473, 0.0
      %475 = vadd.xlane.f32.xlu0 %v474
      %v476 = vpop.xlane.xlu0 %475
      %v477 = vrcp.pop %v476
      %v478 = vmul.f32 %v473, %v477
      %479 = vrot.lane.b32.xlu0 %v243, 104
      %v480 = vpop.permute.xlu0 %479
      %v483 = vsel %vm248, %v478, 0
      %485 = vmatpush.msra.mxu0 0.0
      %486 = vmatpush.msra.mxu0 0.0
      %487 = vmatpush.msra.mxu0 0.0
      %488 = vmatpush.msra.mxu0 0.0
      %489 = vmatpush.msra.mxu0 0.0
      %490 = vmatpush.msra.mxu0 0.0
      %491 = vmatpush.msra.mxu0 0.0
      %492 = vmatpush.msra.mxu0 0.0
      %493 = vmatpush.msra.mxu0 0.0
      %494 = vmatpush.msra.mxu0 0.0
      %495 = vmatpush.msra.mxu0 0.0
      %496 = vmatpush.msra.mxu0 0.0
      %497 = vmatpush.msra.mxu0 0.0
      %498 = vmatpush.msra.mxu0 0.0
      %499 = vmatpush.msra.mxu0 0.0
      %500 = vmatpush.msra.mxu0 %v480
      %501 = vmatmul.f32.gmra.mxu0 %v483
      %v502 = vpop.f32.mrf.mxu0
      %v503 = vadd.f32 0.0, %v502
      %504 = vdwg.mxu0
      %506 = vrot.lane.b32.xlu0 %v373, 8
      %v507 = vpop.permute.xlu0 %506
      %510 = vrot.lane.b32.xlu0 %v438, 16
      %v511 = vpop.permute.xlu0 %510
      %514 = vrot.lane.b32.xlu0 %v503, 24
      %v515 = vpop.permute.xlu0 %514
      %v517 = vsel %vm248, %v307, %v507
      %vm518 = vcmask 130048
      %v519 = vsel %vm518, %v517, %v511
      %vm520 = vcmask 195584
      %v521 = vsel %vm520, %v519, %v515
      %vm522 = vcmask 261120
      %523 = vst.msk [vmem:[%s240] sm:$0xff] %vm522, %v521
      %p524 = scmp.lt.s32.totalorder %s15, 1
      %s525 = scalar_select %p524, %s15, 1
      %s526 = smul.addr %s525, 8
      %s527 = scalar_lea.vmem %s4, %s526
      // Predicated region
      $region37: #{decoder_layer_forward.9} parent=35 // pred_check
        %p528 = pneg %p137
      $region38: #{decoder_layer_forward.9} parent=35 // pred_check_branch
        %530 = sbr.rel (%p528) target = $region40
      $region39: #{decoder_layer_forward.9} parent=35 // pred_region
        _
      $region40: #{decoder_layer_forward.9} parent=35 // pred_fallthru
        _
    $region36: #{decoder_layer_forward.9} parent=5 // pred_fallthru
      _
    %p531 = scmp.le.s32.totalorder 2, %s10
    // Predicated region
    $region41: #{decoder_layer_forward.9} parent=5 // pred_check
      %p532 = pneg %p531
    $region42: #{decoder_layer_forward.9} parent=5 // pred_check_branch
      %534 = sbr.rel (%p532) target = $region44
    $region43: #{decoder_layer_forward.9} parent=5 // pred_region
      %s535 = ssub.s32 %s10, 2
      // Predicated region
      $region45: #{decoder_layer_forward.9} parent=43 // pred_check
        %p536 = pneg %p143
      $region46: #{decoder_layer_forward.9} parent=43 // pred_check_branch
        %538 = sbr.rel (%p536) target = $region48
      $region47: #{decoder_layer_forward.9} parent=43 // pred_region
        %p539 = scmp.lt.s32.totalorder %s16, 1
        %s540 = scalar_select %p539, %s16, 1
        %s541 = smul.addr %s540, 8
        %s542 = scalar_lea.vmem %s4, %s541
      $region48: #{decoder_layer_forward.9} parent=43 // pred_fallthru
        _
    $region44: #{decoder_layer_forward.9} parent=5 // pred_fallthru
      _
  $region6: #{decoder_layer_forward.9} parent=0 // loop_footer
    %s14 = sadd.s32 1, %s10
  $region7: #{decoder_layer_forward.9} parent=0 // loop_footer_branch
    %9 = sbr.rel target = $region3
  $region8: #{decoder_layer_forward.9} parent=0 // loop_exit
    _

// kernel: decoder_layer_forward.12
$region0: #{decoder_layer_forward.12}
  #allocation0 [shape = 'u32[]', space=smem, size = 0x4, offset = 0x4, fixed_abs, tag = 'smem constant byte address 0x4 - core index']
  #allocation1 [shape = 'u32[72,128]{1,0:T(1,128)}', space=vmem, size = 0x9000, scoped, tag = 'internal scratch']
  %s0 = inlined_call_operand.vmem [shape: f32[16,32], index: 0, kind: input, shape index: {}]
  %s1 = inlined_call_operand.vmem [shape: f32[32,32], index: 1, kind: input, shape index: {}]
  %s2 = inlined_call_operand.vmem [shape: f32[1,32], index: 2, kind: input, shape index: {}]
  %s3 = inlined_call_operand.vmem [shape: f32[32,32], index: 3, kind: input, shape index: {}]
  %s4 = inlined_call_operand.vmem [shape: f32[1,32], index: 4, kind: input, shape index: {}]
  %s5 = inlined_call_operand.vmem [shape: f32[16,32], index: 5, kind: output, shape index: {0}]
  %s6 = inlined_call_operand.vmem [shape: f32[16,32], index: 6, kind: output, shape index: {1}]
  %7 = xla_tuple %s5, %s6
  %s8 = sld [smem:[#allocation0]]
  $region38: #{decoder_layer_forward.12} parent=0
    _
  %s10 = ssub.s32 1, %s8
  %s11 = scalar_select 0, %s10, %s8
  // Predicated region
  $region2: #{decoder_layer_forward.12} parent=0 // pred_check
    _
  $region3: #{decoder_layer_forward.12} parent=0 // pred_check_branch
    %13 = sbr.rel (0) target = $region5
  $region4: #{decoder_layer_forward.12} parent=0 // pred_region
    _
  $region5: #{decoder_layer_forward.12} parent=0 // pred_fallthru
    _
  // Predicated region
  $region6: #{decoder_layer_forward.12} parent=0 // pred_check
    _
  $region7: #{decoder_layer_forward.12} parent=0 // pred_check_branch
    %15 = sbr.rel (0) target = $region9
  $region8: #{decoder_layer_forward.12} parent=0 // pred_region
    _
  $region9: #{decoder_layer_forward.12} parent=0 // pred_fallthru
    _
  // Predicated region
  $region10: #{decoder_layer_forward.12} parent=0 // pred_check
    _
  $region11: #{decoder_layer_forward.12} parent=0 // pred_check_branch
    %17 = sbr.rel (0) target = $region13
  $region12: #{decoder_layer_forward.12} parent=0 // pred_region
    _
  $region13: #{decoder_layer_forward.12} parent=0 // pred_fallthru
    _
  // Predicated region
  $region14: #{decoder_layer_forward.12} parent=0 // pred_check
    _
  $region15: #{decoder_layer_forward.12} parent=0 // pred_check_branch
    %19 = sbr.rel (0) target = $region17
  $region16: #{decoder_layer_forward.12} parent=0 // pred_region
    _
  $region17: #{decoder_layer_forward.12} parent=0 // pred_fallthru
    _
  // Predicated region
  $region18: #{decoder_layer_forward.12} parent=0 // pred_check
    _
  $region19: #{decoder_layer_forward.12} parent=0 // pred_check_branch
    %21 = sbr.rel (0) target = $region21
  $region20: #{decoder_layer_forward.12} parent=0 // pred_region
    _
  $region21: #{decoder_layer_forward.12} parent=0 // pred_fallthru
    _
  %v22 = vld [vmem:[%s0] sm:$0xff]
  %v23 = vld [vmem:[%s0 + $0x8] sm:$0xff]
  %v24 = vld [vmem:[%s1] sm:$0xff]
  %v25 = vld [vmem:[%s1 + $0x8] sm:$0xff]
  %v26 = vld [vmem:[%s1 + $0x10] sm:$0xff]
  %v27 = vld [vmem:[%s1 + $0x18] sm:$0xff]
  %v28 = vld [vmem:[%s2] sm:$0x1]
  %v30 = vperm.slane %v28, 0
  %vm32 = vcmask 261120
  %v34 = vsel %vm32, %v22, 0
  %v37 = vsel %vm32, %v23, 0
  %39 = vmatpush.msra.mxu0 0.0
  %40 = vmatpush.msra.mxu0 0.0
  %41 = vmatpush.msra.mxu0 0.0
  %42 = vmatpush.msra.mxu0 0.0
  %43 = vmatpush.msra.mxu0 0.0
  %44 = vmatpush.msra.mxu0 0.0
  %45 = vmatpush.msra.mxu0 0.0
  %46 = vmatpush.msra.mxu0 0.0
  %47 = vmatpush.msra.mxu0 0.0
  %48 = vmatpush.msra.mxu0 0.0
  %49 = vmatpush.msra.mxu0 0.0
  %50 = vmatpush.msra.mxu0 0.0
  %51 = vmatpush.msra.mxu0 %v27
  %52 = vmatpush.msra.mxu0 %v26
  %53 = vmatpush.msra.mxu0 %v25
  %54 = vmatpush.msra.mxu0 %v24
  %55 = vmatmul.f32.gmra.mxu0 %v34
  %v56 = vpop.f32.mrf.mxu0
  %v57 = vadd.f32 %v30, %v56
  %58 = vmatmul.f32.gmra.mxu0 %v37
  %v59 = vpop.f32.mrf.mxu0
  %v60 = vadd.f32 %v30, %v59
  %61 = vdwg.mxu0
  %62 = vst.msk [vmem:[%s5] sm:$0xff] %vm32, %v57
  %63 = vst.msk [vmem:[%s5 + $0x8] sm:$0xff] %vm32, %v60
  %v64 = vld [vmem:[%s3] sm:$0xff]
  %v65 = vld [vmem:[%s3 + $0x8] sm:$0xff]
  %v66 = vld [vmem:[%s3 + $0x10] sm:$0xff]
  %v67 = vld [vmem:[%s3 + $0x18] sm:$0xff]
  %v68 = vld [vmem:[%s4] sm:$0x1]
  %v70 = vperm.slane %v68, 0
  %72 = vmatpush.msra.mxu0 0.0
  %73 = vmatpush.msra.mxu0 0.0
  %74 = vmatpush.msra.mxu0 0.0
  %75 = vmatpush.msra.mxu0 0.0
  %76 = vmatpush.msra.mxu0 0.0
  %77 = vmatpush.msra.mxu0 0.0
  %78 = vmatpush.msra.mxu0 0.0
  %79 = vmatpush.msra.mxu0 0.0
  %80 = vmatpush.msra.mxu0 0.0
  %81 = vmatpush.msra.mxu0 0.0
  %82 = vmatpush.msra.mxu0 0.0
  %83 = vmatpush.msra.mxu0 0.0
  %84 = vmatpush.msra.mxu0 %v67
  %85 = vmatpush.msra.mxu0 %v66
  %86 = vmatpush.msra.mxu0 %v65
  %87 = vmatpush.msra.mxu0 %v64
  %88 = vmatmul.f32.gmra.mxu0 %v34
  %v89 = vpop.f32.mrf.mxu0
  %v90 = vadd.f32 %v70, %v89
  %91 = vmatmul.f32.gmra.mxu0 %v37
  %v92 = vpop.f32.mrf.mxu0
  %v93 = vadd.f32 %v70, %v92
  %94 = vdwg.mxu0
  %95 = vst.msk [vmem:[%s6] sm:$0xff] %vm32, %v90
  %96 = vst.msk [vmem:[%s6 + $0x8] sm:$0xff] %vm32, %v93
  // Predicated region
  $region22: #{decoder_layer_forward.12} parent=0 // pred_check
    _
  $region23: #{decoder_layer_forward.12} parent=0 // pred_check_branch
    %98 = sbr.rel (0) target = $region25
  $region24: #{decoder_layer_forward.12} parent=0 // pred_region
    _
  $region25: #{decoder_layer_forward.12} parent=0 // pred_fallthru
    _
  // Predicated region
  $region26: #{decoder_layer_forward.12} parent=0 // pred_check
    _
  $region27: #{decoder_layer_forward.12} parent=0 // pred_check_branch
    %100 = sbr.rel (0) target = $region29
  $region28: #{decoder_layer_forward.12} parent=0 // pred_region
    _
  $region29: #{decoder_layer_forward.12} parent=0 // pred_fallthru
    _
  // Predicated region
  $region30: #{decoder_layer_forward.12} parent=0 // pred_check
    _
  $region31: #{decoder_layer_forward.12} parent=0 // pred_check_branch
    %102 = sbr.rel (0) target = $region33
  $region32: #{decoder_layer_forward.12} parent=0 // pred_region
    _
  $region33: #{decoder_layer_forward.12} parent=0 // pred_fallthru
    _
  // Predicated region
  $region34: #{decoder_layer_forward.12} parent=0 // pred_check
    _
  $region35: #{decoder_layer_forward.12} parent=0 // pred_check_branch
    %104 = sbr.rel (0) target = $region37
  $region36: #{decoder_layer_forward.12} parent=0 // pred_region
    _
  $region37: #{decoder_layer_forward.12} parent=0 // pred_fallthru
    _

// kernel: decoder_layer_forward.15
$region0: #{decoder_layer_forward.15}
  #allocation0 [shape = 'u32[]', space=smem, size = 0x4, offset = 0x4, fixed_abs, tag = 'smem constant byte address 0x4 - core index']
  #allocation1 [shape = 'u32[72,128]{1,0:T(1,128)}', space=vmem, size = 0x9000, scoped, tag = 'internal scratch']
  %s0 = inlined_call_operand.vmem [shape: f32[16,32], index: 0, kind: input, shape index: {}]
  %s1 = inlined_call_operand.vmem [shape: f32[32,64], index: 1, kind: input, shape index: {}]
  %s2 = inlined_call_operand.vmem [shape: f32[1,64], index: 2, kind: input, shape index: {}]
  %s3 = inlined_call_operand.vmem [shape: f32[64,32], index: 3, kind: input, shape index: {}]
  %s4 = inlined_call_operand.vmem [shape: f32[1,32], index: 4, kind: input, shape index: {}]
  %s5 = inlined_call_operand.vmem [shape: f32[1,32], index: 5, kind: input, shape index: {}]
  %s6 = inlined_call_operand.vmem [shape: f32[1,32], index: 6, kind: input, shape index: {}]
  %s7 = inlined_call_operand.vmem [shape: f32[16,32], index: 7, kind: output, shape index: {}]
  %s8 = sld [smem:[#allocation0]]
  $region38: #{decoder_layer_forward.15} parent=0
    _
  %s10 = ssub.s32 1, %s8
  %s11 = scalar_select 0, %s10, %s8
  // Predicated region
  $region2: #{decoder_layer_forward.15} parent=0 // pred_check
    _
  $region3: #{decoder_layer_forward.15} parent=0 // pred_check_branch
    %13 = sbr.rel (0) target = $region5
  $region4: #{decoder_layer_forward.15} parent=0 // pred_region
    _
  $region5: #{decoder_layer_forward.15} parent=0 // pred_fallthru
    _
  // Predicated region
  $region6: #{decoder_layer_forward.15} parent=0 // pred_check
    _
  $region7: #{decoder_layer_forward.15} parent=0 // pred_check_branch
    %15 = sbr.rel (0) target = $region9
  $region8: #{decoder_layer_forward.15} parent=0 // pred_region
    _
  $region9: #{decoder_layer_forward.15} parent=0 // pred_fallthru
    _
  // Predicated region
  $region10: #{decoder_layer_forward.15} parent=0 // pred_check
    _
  $region11: #{decoder_layer_forward.15} parent=0 // pred_check_branch
    %17 = sbr.rel (0) target = $region13
  $region12: #{decoder_layer_forward.15} parent=0 // pred_region
    _
  $region13: #{decoder_layer_forward.15} parent=0 // pred_fallthru
    _
  // Predicated region
  $region14: #{decoder_layer_forward.15} parent=0 // pred_check
    _
  $region15: #{decoder_layer_forward.15} parent=0 // pred_check_branch
    %19 = sbr.rel (0) target = $region17
  $region16: #{decoder_layer_forward.15} parent=0 // pred_region
    _
  $region17: #{decoder_layer_forward.15} parent=0 // pred_fallthru
    _
  // Predicated region
  $region18: #{decoder_layer_forward.15} parent=0 // pred_check
    _
  $region19: #{decoder_layer_forward.15} parent=0 // pred_check_branch
    %21 = sbr.rel (0) target = $region21
  $region20: #{decoder_layer_forward.15} parent=0 // pred_region
    _
  $region21: #{decoder_layer_forward.15} parent=0 // pred_fallthru
    _
  // Predicated region
  $region22: #{decoder_layer_forward.15} parent=0 // pred_check
    _
  $region23: #{decoder_layer_forward.15} parent=0 // pred_check_branch
    %23 = sbr.rel (0) target = $region25
  $region24: #{decoder_layer_forward.15} parent=0 // pred_region
    _
  $region25: #{decoder_layer_forward.15} parent=0 // pred_fallthru
    _
  // Predicated region
  $region26: #{decoder_layer_forward.15} parent=0 // pred_check
    _
  $region27: #{decoder_layer_forward.15} parent=0 // pred_check_branch
    %25 = sbr.rel (0) target = $region29
  $region28: #{decoder_layer_forward.15} parent=0 // pred_region
    _
  $region29: #{decoder_layer_forward.15} parent=0 // pred_fallthru
    _
  %v26 = vld [vmem:[%s0] sm:$0xff]
  %v27 = vld [vmem:[%s0 + $0x8] sm:$0xff]
  %v28 = vld [vmem:[%s1] sm:$0xff]
  %v29 = vld [vmem:[%s1 + $0x8] sm:$0xff]
  %v30 = vld [vmem:[%s1 + $0x10] sm:$0xff]
  %v31 = vld [vmem:[%s1 + $0x18] sm:$0xff]
  %v32 = vld [vmem:[%s2] sm:$0x1]
  %v34 = vperm.slane %v32, 0
  %vm36 = vcmask 261120
  %v38 = vsel %vm36, %v26, 0
  %v41 = vsel %vm36, %v27, 0
  %43 = vmatpush.msra.mxu0 0.0
  %44 = vmatpush.msra.mxu0 0.0
  %45 = vmatpush.msra.mxu0 0.0
  %46 = vmatpush.msra.mxu0 0.0
  %47 = vmatpush.msra.mxu0 0.0
  %48 = vmatpush.msra.mxu0 0.0
  %49 = vmatpush.msra.mxu0 0.0
  %50 = vmatpush.msra.mxu0 0.0
  %51 = vmatpush.msra.mxu0 0.0
  %52 = vmatpush.msra.mxu0 0.0
  %53 = vmatpush.msra.mxu0 0.0
  %54 = vmatpush.msra.mxu0 0.0
  %55 = vmatpush.msra.mxu0 %v31
  %56 = vmatpush.msra.mxu0 %v30
  %57 = vmatpush.msra.mxu0 %v29
  %58 = vmatpush.msra.mxu0 %v28
  %59 = vmatmul.f32.gmra.mxu0 %v38
  %v60 = vpop.f32.mrf.mxu0
  %v61 = vadd.f32 %v34, %v60
  %62 = vmatmul.f32.gmra.mxu0 %v41
  %v63 = vpop.f32.mrf.mxu0
  %v64 = vadd.f32 %v34, %v63
  %65 = vdwg.mxu0
  %v66 = vmax.f32 %v61, 0.0
  %v67 = vmax.f32 %v64, 0.0
  %v68 = vld [vmem:[%s3] sm:$0xff]
  %v69 = vld [vmem:[%s3 + $0x8] sm:$0xff]
  %v70 = vld [vmem:[%s3 + $0x10] sm:$0xff]
  %v71 = vld [vmem:[%s3 + $0x18] sm:$0xff]
  %v72 = vld [vmem:[%s3 + $0x20] sm:$0xff]
  %v73 = vld [vmem:[%s3 + $0x28] sm:$0xff]
  %v74 = vld [vmem:[%s3 + $0x30] sm:$0xff]
  %v75 = vld [vmem:[%s3 + $0x38] sm:$0xff]
  %v76 = vld [vmem:[%s4] sm:$0x1]
  %v78 = vperm.slane %v76, 0
  %vm80 = vcmask 523264
  %v82 = vsel %vm80, %v66, 0
  %v85 = vsel %vm80, %v67, 0
  %87 = vmatpush.msra.mxu0 0.0
  %88 = vmatpush.msra.mxu0 0.0
  %89 = vmatpush.msra.mxu0 0.0
  %90 = vmatpush.msra.mxu0 0.0
  %91 = vmatpush.msra.mxu0 0.0
  %92 = vmatpush.msra.mxu0 0.0
  %93 = vmatpush.msra.mxu0 0.0
  %94 = vmatpush.msra.mxu0 0.0
  %95 = vmatpush.msra.mxu0 %v75
  %96 = vmatpush.msra.mxu0 %v74
  %97 = vmatpush.msra.mxu0 %v73
  %98 = vmatpush.msra.mxu0 %v72
  %99 = vmatpush.msra.mxu0 %v71
  %100 = vmatpush.msra.mxu0 %v70
  %101 = vmatpush.msra.mxu0 %v69
  %102 = vmatpush.msra.mxu0 %v68
  %103 = vmatmul.f32.gmra.mxu0 %v82
  %v104 = vpop.f32.mrf.mxu0
  %v105 = vadd.f32 %v78, %v104
  %106 = vmatmul.f32.gmra.mxu0 %v85
  %v107 = vpop.f32.mrf.mxu0
  %v108 = vadd.f32 %v78, %v107
  %109 = vdwg.mxu0
  %v110 = vadd.f32 %v26, %v105
  %v111 = vadd.f32 %v27, %v108
  %v112 = vld [vmem:[%s5] sm:$0x1]
  %v113 = vld [vmem:[%s6] sm:$0x1]
  %v114 = vsel %vm36, %v110, 0.0
  %115 = vadd.xlane.f32.xlu0 %v114
  %v116 = vpop.xlane.xlu0 %115
  %v117 = vsel %vm36, %v111, 0.0
  %118 = vadd.xlane.f32.xlu0 %v117
  %v119 = vpop.xlane.xlu0 %118
  %v120 = vrcp.pop 32.0
  %v121 = vmul.f32 32.0, %v120
  %v122 = vsub.f32 1.0, %v121
  %v123 = vmul.f32 %v120, %v122
  %v124 = vadd.f32 %v120, %v123
  %vm125 = vweird.f32 %v120
  %v126 = vsel %vm125, %v120, %v124
  %v127 = vmul.f32 %v116, %v126
  %v128 = vmul.f32 %v119, %v126
  %v129 = vsub.f32 %v110, %v127
  %v130 = vsub.f32 %v111, %v128
  %v131 = vmul.f32 %v129, %v129
  %v132 = vmul.f32 %v130, %v130
  %v133 = vsel %vm36, %v131, 0.0
  %134 = vadd.xlane.f32.xlu0 %v133
  %v135 = vpop.xlane.xlu0 %134
  %v136 = vsel %vm36, %v132, 0.0
  %137 = vadd.xlane.f32.xlu0 %v136
  %v138 = vpop.xlane.xlu0 %137
  %v139 = vmul.f32 %v135, %v126
  %v140 = vmul.f32 %v138, %v126
  %v141 = vadd.f32 %v139, 1e-05
  %v142 = vadd.f32 %v140, 1e-05
  %v143 = vrsqrt.pop %v141
  %v144 = vmul.f32 %v143, %v141
  %v145 = vmul.f32 %v144, %v143
  %v146 = vmul.f32 0.5, %v145
  %v147 = vsub.f32 1.5, %v146
  %v148 = vmul.f32 %v143, %v147
  %vm149 = vweird.f32 %v141
  %vm150 = vweird.f32 %v143
  %vm151 = vmor %vm149, %vm150
  %v152 = vsel %vm151, %v143, %v148
  %v153 = vrsqrt.pop %v142
  %v154 = vmul.f32 %v153, %v142
  %v155 = vmul.f32 %v154, %v153
  %v156 = vmul.f32 0.5, %v155
  %v157 = vsub.f32 1.5, %v156
  %v158 = vmul.f32 %v153, %v157
  %vm159 = vweird.f32 %v142
  %vm160 = vweird.f32 %v153
  %vm161 = vmor %vm159, %vm160
  %v162 = vsel %vm161, %v153, %v158
  %v163 = vmul.f32 %v129, %v152
  %v164 = vmul.f32 %v130, %v162
  %v166 = vperm.slane %v112, 0
  %v168 = vmul.f32 %v163, %v166
  %v169 = vmul.f32 %v164, %v166
  %v171 = vperm.slane %v113, 0
  %v173 = vadd.f32 %v168, %v171
  %v174 = vadd.f32 %v169, %v171
  %175 = vst.msk [vmem:[%s7] sm:$0xff] %vm36, %v173
  %176 = vst.msk [vmem:[%s7 + $0x8] sm:$0xff] %vm36, %v174
  // Predicated region
  $region30: #{decoder_layer_forward.15} parent=0 // pred_check
    _
  $region31: #{decoder_layer_forward.15} parent=0 // pred_check_branch
    %178 = sbr.rel (0) target = $region33
  $region32: #{decoder_layer_forward.15} parent=0 // pred_region
    _
  $region33: #{decoder_layer_forward.15} parent=0 // pred_fallthru
    _
  // Predicated region
  $region34: #{decoder_layer_forward.15} parent=0 // pred_check
    _
  $region35: #{decoder_layer_forward.15} parent=0 // pred_check_branch
    %180 = sbr.rel (0) target = $region37
  $region36: #{decoder_layer_forward.15} parent=0 // pred_region
    _
  $region37: #{decoder_layer_forward.15} parent=0 // pred_fallthru
    _

// kernel: decoder_layer_forward.14
$region0: #{decoder_layer_forward.14}
  #allocation0 [shape = 'u32[]', space=smem, size = 0x4, offset = 0x4, fixed_abs, tag = 'smem constant byte address 0x4 - core index']
  #allocation1 [shape = 'u32[72,128]{1,0:T(1,128)}', space=vmem, size = 0x9000, scoped, tag = 'internal scratch']
  %s0 = inlined_call_operand.vmem [shape: f32[16,32], index: 0, kind: input, shape index: {}]
  %s1 = inlined_call_operand.vmem [shape: f32[16,32], index: 1, kind: input, shape index: {}]
  %s2 = inlined_call_operand.hbm [shape: f32[32,32], index: 2, kind: input, shape index: {}]
  %s3 = inlined_call_operand.vmem [shape: f32[1,32], index: 3, kind: input, shape index: {}]
  %s4 = inlined_call_operand.hbm [shape: f32[32,32], index: 4, kind: input, shape index: {}]
  %s5 = inlined_call_operand.vmem [shape: f32[1,32], index: 5, kind: input, shape index: {}]
  %s6 = inlined_call_operand.hbm [shape: f32[32,32], index: 6, kind: input, shape index: {}]
  %s7 = inlined_call_operand.vmem [shape: f32[1,32], index: 7, kind: input, shape index: {}]
  %s8 = inlined_call_operand.vmem [shape: f32[1,32], index: 8, kind: input, shape index: {}]
  %s9 = inlined_call_operand.vmem [shape: f32[1,32], index: 9, kind: input, shape index: {}]
  %s10 = inlined_call_operand.vmem [shape: f32[16,32], index: 10, kind: output, shape index: {}]
  %s11 = sld [smem:[#allocation0]]
  $region62: #{decoder_layer_forward.14} parent=0
    _
  %s13 = ssub.s32 1, %s11
  %s14 = scalar_select 0, %s13, %s11
  $region1: #{decoder_layer_forward.14} parent=0
    #allocation2 [shape = 'u8[16384]{0}', space=vmem, size = 0x4000, scoped, tag = 'input window, operand 2, single buffered']
    #allocation3 [shape = 's32[1]{0}', space=sflag, size = 0x4, scoped, tag = 'scoped memory for decoder_layer_forward.14']
    #allocation4 [shape = 'u8[16384]{0}', space=vmem, size = 0x4000, scoped, tag = 'input window, operand 4, single buffered']
    #allocation5 [shape = 's32[1]{0}', space=sflag, size = 0x4, scoped, tag = 'scoped memory for decoder_layer_forward.14']
    #allocation6 [shape = 'u8[16384]{0}', space=vmem, size = 0x4000, scoped, tag = 'input window, operand 6, single buffered']
    %15 = vsyncpa [#allocation3], 0
    %16 = vsyncpa [#allocation5], 0
    // Predicated region
    $region2: #{decoder_layer_forward.14} parent=1 // pred_check
      _
    $region3: #{decoder_layer_forward.14} parent=1 // pred_check_branch
      %18 = sbr.rel (0) target = $region5
    $region4: #{decoder_layer_forward.14} parent=1 // pred_region
      _
    $region5: #{decoder_layer_forward.14} parent=1 // pred_fallthru
      _
    // Predicated region
    $region6: #{decoder_layer_forward.14} parent=1 // pred_check
      _
    $region7: #{decoder_layer_forward.14} parent=1 // pred_check_branch
      %20 = sbr.rel (0) target = $region9
    $region8: #{decoder_layer_forward.14} parent=1 // pred_region
      _
    $region9: #{decoder_layer_forward.14} parent=1 // pred_fallthru
      _
    // Predicated region
    $region10: #{decoder_layer_forward.14} parent=1 // pred_check
      _
    $region11: #{decoder_layer_forward.14} parent=1 // pred_check_branch
      %22 = sbr.rel (0) target = $region13
    $region12: #{decoder_layer_forward.14} parent=1 // pred_region
      %24 = vsyncadd [#allocation3], 0
      %s25 = sshll.u32 %s2, 4
      %s26 = int_to_ptr.hbm [resolvable:$true] %s25
      %s27 = sshll.u32 [#allocation2], 4
      %s28 = int_to_ptr.vmem [resolvable:$true] %s27
      %33 = dma.hbm_to_vmem [thread:$0]  %s26, 512, %s28, [#allocation3], 128, 128, 8
    $region13: #{decoder_layer_forward.14} parent=1 // pred_fallthru
      _
    // Predicated region
    $region14: #{decoder_layer_forward.14} parent=1 // pred_check
      _
    $region15: #{decoder_layer_forward.14} parent=1 // pred_check_branch
      %35 = sbr.rel (0) target = $region17
    $region16: #{decoder_layer_forward.14} parent=1 // pred_region
      _
    $region17: #{decoder_layer_forward.14} parent=1 // pred_fallthru
      _
    // Predicated region
    $region18: #{decoder_layer_forward.14} parent=1 // pred_check
      _
    $region19: #{decoder_layer_forward.14} parent=1 // pred_check_branch
      %37 = sbr.rel (0) target = $region21
    $region20: #{decoder_layer_forward.14} parent=1 // pred_region
      %39 = vsyncadd [#allocation5], 0
      %s40 = sshll.u32 %s4, 4
      %s41 = int_to_ptr.hbm [resolvable:$true] %s40
      %s42 = sshll.u32 [#allocation4], 4
      %s43 = int_to_ptr.vmem [resolvable:$true] %s42
      %48 = dma.hbm_to_vmem [thread:$0]  %s41, 512, %s43, [#allocation5], 128, 128, 8
    $region21: #{decoder_layer_forward.14} parent=1 // pred_fallthru
      _
    // Predicated region
    $region22: #{decoder_layer_forward.14} parent=1 // pred_check
      _
    $region23: #{decoder_layer_forward.14} parent=1 // pred_check_branch
      %50 = sbr.rel (0) target = $region25
    $region24: #{decoder_layer_forward.14} parent=1 // pred_region
      _
    $region25: #{decoder_layer_forward.14} parent=1 // pred_fallthru
      _
    // Predicated region
    $region26: #{decoder_layer_forward.14} parent=1 // pred_check
      _
    $region27: #{decoder_layer_forward.14} parent=1 // pred_check_branch
      %52 = sbr.rel (0) target = $region29
    $region28: #{decoder_layer_forward.14} parent=1 // pred_region
      %54 = vsyncadd [#allocation5], 0
      %s55 = sshll.u32 %s6, 4
      %s56 = int_to_ptr.hbm [resolvable:$true] %s55
      %s57 = sshll.u32 [#allocation6], 4
      %s58 = int_to_ptr.vmem [resolvable:$true] %s57
      %63 = dma.hbm_to_vmem [thread:$0]  %s56, 512, %s58, [#allocation5], 128, 128, 8
    $region29: #{decoder_layer_forward.14} parent=1 // pred_fallthru
      _
    // Predicated region
    $region30: #{decoder_layer_forward.14} parent=1 // pred_check
      _
    $region31: #{decoder_layer_forward.14} parent=1 // pred_check_branch
      %65 = sbr.rel (0) target = $region33
    $region32: #{decoder_layer_forward.14} parent=1 // pred_region
      _
    $region33: #{decoder_layer_forward.14} parent=1 // pred_fallthru
      _
    // Predicated region
    $region34: #{decoder_layer_forward.14} parent=1 // pred_check
      _
    $region35: #{decoder_layer_forward.14} parent=1 // pred_check_branch
      %67 = sbr.rel (0) target = $region37
    $region36: #{decoder_layer_forward.14} parent=1 // pred_region
      _
    $region37: #{decoder_layer_forward.14} parent=1 // pred_fallthru
      _
    // Predicated region
    $region38: #{decoder_layer_forward.14} parent=1 // pred_check
      _
    $region39: #{decoder_layer_forward.14} parent=1 // pred_check_branch
      %69 = sbr.rel (0) target = $region41
    $region40: #{decoder_layer_forward.14} parent=1 // pred_region
      _
    $region41: #{decoder_layer_forward.14} parent=1 // pred_fallthru
      _
    // Predicated region
    $region42: #{decoder_layer_forward.14} parent=1 // pred_check
      _
    $region43: #{decoder_layer_forward.14} parent=1 // pred_check_branch
      %71 = sbr.rel (0) target = $region45
    $region44: #{decoder_layer_forward.14} parent=1 // pred_region
      %73 = dma.done [#allocation3], 512
    $region45: #{decoder_layer_forward.14} parent=1 // pred_fallthru
      _
    // Predicated region
    $region46: #{decoder_layer_forward.14} parent=1 // pred_check
      _
    $region47: #{decoder_layer_forward.14} parent=1 // pred_check_branch
      %75 = sbr.rel (0) target = $region49
    $region48: #{decoder_layer_forward.14} parent=1 // pred_region
      %77 = dma.done [#allocation5], 512
    $region49: #{decoder_layer_forward.14} parent=1 // pred_fallthru
      _
    // Predicated region
    $region50: #{decoder_layer_forward.14} parent=1 // pred_check
      _
    $region51: #{decoder_layer_forward.14} parent=1 // pred_check_branch
      %79 = sbr.rel (0) target = $region53
    $region52: #{decoder_layer_forward.14} parent=1 // pred_region
      %81 = dma.done [#allocation5], 512
    $region53: #{decoder_layer_forward.14} parent=1 // pred_fallthru
      _
    %v82 = vld [vmem:[%s0] sm:$0xff]
    %v83 = vld [vmem:[%s0 + $0x8] sm:$0xff]
    %v84 = vld [vmem:[#allocation2] sm:$0xff]
    %v85 = vld [vmem:[#allocation2 + $0x8] sm:$0xff]
    %v86 = vld [vmem:[#allocation2 + $0x10] sm:$0xff]
    %v87 = vld [vmem:[#allocation2 + $0x18] sm:$0xff]
    %v88 = vld [vmem:[%s3] sm:$0x1]
    %v90 = vperm.slane %v88, 0
    %vm92 = vcmask 261120
    %v94 = vsel %vm92, %v82, 0
    %v97 = vsel %vm92, %v83, 0
    %99 = vmatpush.msra.mxu0 0.0
    %100 = vmatpush.msra.mxu0 0.0
    %101 = vmatpush.msra.mxu0 0.0
    %102 = vmatpush.msra.mxu0 0.0
    %103 = vmatpush.msra.mxu0 0.0
    %104 = vmatpush.msra.mxu0 0.0
    %105 = vmatpush.msra.mxu0 0.0
    %106 = vmatpush.msra.mxu0 0.0
    %107 = vmatpush.msra.mxu0 0.0
    %108 = vmatpush.msra.mxu0 0.0
    %109 = vmatpush.msra.mxu0 0.0
    %110 = vmatpush.msra.mxu0 0.0
    %111 = vmatpush.msra.mxu0 %v87
    %112 = vmatpush.msra.mxu0 %v86
    %113 = vmatpush.msra.mxu0 %v85
    %114 = vmatpush.msra.mxu0 %v84
    %115 = vmatmul.f32.gmra.mxu0 %v94
    %v116 = vpop.f32.mrf.mxu0
    %v117 = vadd.f32 %v90, %v116
    %118 = vmatmul.f32.gmra.mxu0 %v97
    %v119 = vpop.f32.mrf.mxu0
    %v120 = vadd.f32 %v90, %v119
    %121 = vdwg.mxu0
    %v122 = vld [vmem:[%s1] sm:$0xff]
    %v123 = vld [vmem:[%s1 + $0x8] sm:$0xff]
    %v124 = vld [vmem:[#allocation4] sm:$0xff]
    %v125 = vld [vmem:[#allocation4 + $0x8] sm:$0xff]
    %v126 = vld [vmem:[#allocation4 + $0x10] sm:$0xff]
    %v127 = vld [vmem:[#allocation4 + $0x18] sm:$0xff]
    %v128 = vld [vmem:[%s5] sm:$0x1]
    %v130 = vperm.slane %v128, 0
    %v133 = vsel %vm92, %v122, 0
    %v136 = vsel %vm92, %v123, 0
    %138 = vmatpush.msra.mxu0 0.0
    %139 = vmatpush.msra.mxu0 0.0
    %140 = vmatpush.msra.mxu0 0.0
    %141 = vmatpush.msra.mxu0 0.0
    %142 = vmatpush.msra.mxu0 0.0
    %143 = vmatpush.msra.mxu0 0.0
    %144 = vmatpush.msra.mxu0 0.0
    %145 = vmatpush.msra.mxu0 0.0
    %146 = vmatpush.msra.mxu0 0.0
    %147 = vmatpush.msra.mxu0 0.0
    %148 = vmatpush.msra.mxu0 0.0
    %149 = vmatpush.msra.mxu0 0.0
    %150 = vmatpush.msra.mxu0 %v127
    %151 = vmatpush.msra.mxu0 %v126
    %152 = vmatpush.msra.mxu0 %v125
    %153 = vmatpush.msra.mxu0 %v124
    %154 = vmatmul.f32.gmra.mxu0 %v133
    %v155 = vpop.f32.mrf.mxu0
    %v156 = vadd.f32 %v130, %v155
    %157 = vmatmul.f32.gmra.mxu0 %v136
    %v158 = vpop.f32.mrf.mxu0
    %v159 = vadd.f32 %v130, %v158
    %160 = vdwg.mxu0
    %v161 = vld [vmem:[#allocation6] sm:$0xff]
    %v162 = vld [vmem:[#allocation6 + $0x8] sm:$0xff]
    %v163 = vld [vmem:[#allocation6 + $0x10] sm:$0xff]
    %v164 = vld [vmem:[#allocation6 + $0x18] sm:$0xff]
    %v165 = vld [vmem:[%s7] sm:$0x1]
    %v167 = vperm.slane %v165, 0
    %v170 = vsel %vm92, %v117, 0
    %v173 = vsel %vm92, %v120, 0
    %175 = vmatpush.msra.mxu0 0.0
    %176 = vmatpush.msra.mxu0 0.0
    %177 = vmatpush.msra.mxu0 0.0
    %178 = vmatpush.msra.mxu0 0.0
    %179 = vmatpush.msra.mxu0 0.0
    %180 = vmatpush.msra.mxu0 0.0
    %181 = vmatpush.msra.mxu0 0.0
    %182 = vmatpush.msra.mxu0 0.0
    %183 = vmatpush.msra.mxu0 0.0
    %184 = vmatpush.msra.mxu0 0.0
    %185 = vmatpush.msra.mxu0 0.0
    %186 = vmatpush.msra.mxu0 0.0
    %187 = vmatpush.msra.mxu0 %v164
    %188 = vmatpush.msra.mxu0 %v163
    %189 = vmatpush.msra.mxu0 %v162
    %190 = vmatpush.msra.mxu0 %v161
    %191 = vmatmul.f32.gmra.mxu0 %v170
    %v192 = vpop.f32.mrf.mxu0
    %v193 = vadd.f32 %v167, %v192
    %194 = vmatmul.f32.gmra.mxu0 %v173
    %v195 = vpop.f32.mrf.mxu0
    %v196 = vadd.f32 %v167, %v195
    %197 = vdwg.mxu0
    %v198 = vadd.f32 %v156, %v193
    %v199 = vadd.f32 %v159, %v196
    %v200 = vxor.u32 %v198, 2147483648
    %v201 = vxor.u32 %v199, 2147483648
    %v202 = vmul.f32 %v200, 1.442695
    %v203 = vpow.pop %v202
    %v204 = vmul.f32 %v201, 1.442695
    %v205 = vpow.pop %v204
    %v206 = vadd.f32 %v203, 1.0
    %v207 = vadd.f32 %v205, 1.0
    %v208 = vrcp.pop %v206
    %v209 = vmul.f32 %v206, %v208
    %v210 = vsub.f32 1.0, %v209
    %v211 = vmul.f32 %v208, %v210
    %v212 = vadd.f32 %v208, %v211
    %vm213 = vweird.f32 %v206
    %vm214 = vweird.f32 %v208
    %vm215 = vmor %vm213, %vm214
    %v216 = vsel %vm215, %v208, %v212
    %v217 = vand.u32 2147483647, %v206
    %vm218 = vcmp.eq.f32.partialorder %v217, 8.507059e+37
    %v219 = vand.u32 %v206, 2147483648
    %v220 = vor.u32 1.1754944e-38, %v219
    %v221 = vsel %vm218, %v220, %v216
    %v222 = vmul.f32 1.0, %v221
    %v223 = vrcp.pop %v207
    %v224 = vmul.f32 %v207, %v223
    %v225 = vsub.f32 1.0, %v224
    %v226 = vmul.f32 %v223, %v225
    %v227 = vadd.f32 %v223, %v226
    %vm228 = vweird.f32 %v207
    %vm229 = vweird.f32 %v223
    %vm230 = vmor %vm228, %vm229
    %v231 = vsel %vm230, %v223, %v227
    %v232 = vand.u32 2147483647, %v207
    %vm233 = vcmp.eq.f32.partialorder %v232, 8.507059e+37
    %v234 = vand.u32 %v207, 2147483648
    %v235 = vor.u32 1.1754944e-38, %v234
    %v236 = vsel %vm233, %v235, %v231
    %v237 = vmul.f32 1.0, %v236
    %v238 = vmul.f32 %v222, %v122
    %v239 = vmul.f32 %v237, %v123
    %v240 = vsub.f32 1.0, %v222
    %v241 = vsub.f32 1.0, %v237
    %v242 = vmul.f32 %v240, %v117
    %v243 = vmul.f32 %v241, %v120
    %v244 = vadd.f32 %v238, %v242
    %v245 = vadd.f32 %v239, %v243
    %v246 = vld [vmem:[%s8] sm:$0x1]
    %v247 = vld [vmem:[%s9] sm:$0x1]
    %v248 = vsel %vm92, %v244, 0.0
    %249 = vadd.xlane.f32.xlu0 %v248
    %v250 = vpop.xlane.xlu0 %249
    %v251 = vsel %vm92, %v245, 0.0
    %252 = vadd.xlane.f32.xlu0 %v251
    %v253 = vpop.xlane.xlu0 %252
    %v254 = vrcp.pop 32.0
    %v255 = vmul.f32 32.0, %v254
    %v256 = vsub.f32 1.0, %v255
    %v257 = vmul.f32 %v254, %v256
    %v258 = vadd.f32 %v254, %v257
    %vm259 = vweird.f32 %v254
    %v260 = vsel %vm259, %v254, %v258
    %v261 = vmul.f32 %v250, %v260
    %v262 = vmul.f32 %v253, %v260
    %v263 = vsub.f32 %v244, %v261
    %v264 = vsub.f32 %v245, %v262
    %v265 = vmul.f32 %v263, %v263
    %v266 = vmul.f32 %v264, %v264
    %v267 = vsel %vm92, %v265, 0.0
    %268 = vadd.xlane.f32.xlu0 %v267
    %v269 = vpop.xlane.xlu0 %268
    %v270 = vsel %vm92, %v266, 0.0
    %271 = vadd.xlane.f32.xlu0 %v270
    %v272 = vpop.xlane.xlu0 %271
    %v273 = vmul.f32 %v269, %v260
    %v274 = vmul.f32 %v272, %v260
    %v275 = vadd.f32 %v273, 1e-05
    %v276 = vadd.f32 %v274, 1e-05
    %v277 = vrsqrt.pop %v275
    %v278 = vmul.f32 %v277, %v275
    %v279 = vmul.f32 %v278, %v277
    %v280 = vmul.f32 0.5, %v279
    %v281 = vsub.f32 1.5, %v280
    %v282 = vmul.f32 %v277, %v281
    %vm283 = vweird.f32 %v275
    %vm284 = vweird.f32 %v277
    %vm285 = vmor %vm283, %vm284
    %v286 = vsel %vm285, %v277, %v282
    %v287 = vrsqrt.pop %v276
    %v288 = vmul.f32 %v287, %v276
    %v289 = vmul.f32 %v288, %v287
    %v290 = vmul.f32 0.5, %v289
    %v291 = vsub.f32 1.5, %v290
    %v292 = vmul.f32 %v287, %v291
    %vm293 = vweird.f32 %v276
    %vm294 = vweird.f32 %v287
    %vm295 = vmor %vm293, %vm294
    %v296 = vsel %vm295, %v287, %v292
    %v297 = vmul.f32 %v263, %v286
    %v298 = vmul.f32 %v264, %v296
    %v300 = vperm.slane %v246, 0
    %v302 = vmul.f32 %v297, %v300
    %v303 = vmul.f32 %v298, %v300
    %v305 = vperm.slane %v247, 0
    %v307 = vadd.f32 %v302, %v305
    %v308 = vadd.f32 %v303, %v305
    %309 = vst.msk [vmem:[%s10] sm:$0xff] %vm92, %v307
    %310 = vst.msk [vmem:[%s10 + $0x8] sm:$0xff] %vm92, %v308
    // Predicated region
    $region54: #{decoder_layer_forward.14} parent=1 // pred_check
      _
    $region55: #{decoder_layer_forward.14} parent=1 // pred_check_branch
      %312 = sbr.rel (0) target = $region57
    $region56: #{decoder_layer_forward.14} parent=1 // pred_region
      _
    $region57: #{decoder_layer_forward.14} parent=1 // pred_fallthru
      _
    // Predicated region
    $region58: #{decoder_layer_forward.14} parent=1 // pred_check
      _
    $region59: #{decoder_layer_forward.14} parent=1 // pred_check_branch
      %314 = sbr.rel (0) target = $region61
    $region60: #{decoder_layer_forward.14} parent=1 // pred_region
      _
    $region61: #{decoder_layer_forward.14} parent=1 // pred_fallthru
      _
    %315 = vsyncpa [#allocation3], 1
    %316 = vsyncpa [#allocation5], 1

</llo_original>
